<compile_context>
chip_gen: v7x
topology: tpu7x:2x2x1
jax: 0.10.0
libtpu: 0.0.40
codegen_flags: <defaults>
</compile_context>

<pallas_src>
import jax
import jax.numpy as jnp
from jax.experimental import pallas as pl
from jax.experimental.pallas import tpu as pltpu


# ----------------------------- Pallas kernel ------------------------------- #

def _lstm2_kernel(x_ref, wx_ref, wc_ref, b_ref, whr_ref, y_ref,
                  prex_ref, sseq_ref, s_state, c_state):
    """One time-chunk of one projected-LSTM direction.

    Ref shapes (stacked direction axis squeezed away by BlockSpec):
      x_ref:    (Tc*Bp, d_pad)  time-major, batch-minor flattened input chunk
      wx_ref:   (d_pad, 4H)     input weights (gate order i,f,o,g; i/f/o cols *0.5)
      wc_ref:   (H, 4H)         combined recurrent weights (w_hh @ w_hr).T (same scaling)
      b_ref:    (1, 4H)         combined bias (same scaling), f32
      whr_ref:  (H, p_pad)      output projection w_hr.T, lane-padded
      y_ref:    (Tc*Bp, p_pad)  projected hidden state per step (chunk slab)
    Scratch:
      prex_ref: (Tc*Bp, 4H) f32 hoisted input projection + bias
      sseq_ref: (Tc*Bp, H)  f32 per-step pre-projection state o*tanh(c)
      s_state:  (Bp, H) f32     state carried across time chunks
      c_state:  (Bp, H) f32     cell state carried across time chunks
    """
    t_blk = pl.program_id(1)
    Tcb = prex_ref.shape[0]
    H = wc_ref.shape[0]
    Bp = s_state.shape[0]
    Tc = Tcb // Bp

    @pl.when(t_blk == 0)
    def _():
        s_state[...] = jnp.zeros_like(s_state)
        c_state[...] = jnp.zeros_like(c_state)

    # (1) Hoisted input projection (+bias) for the whole chunk: one MXU-efficient
    #     matmul, completely off the recurrent dependency chain.
    prex_ref[...] = (jnp.dot(x_ref[...], wx_ref[...],
                             preferred_element_type=jnp.float32)
                     + b_ref[...])

    wc = wc_ref[...]                      # hoisted out of the time loop

    def step(t, carry):
        s, c = carry                      # (Bp, H) f32
        row = pl.multiple_of(t * Bp, Bp)
        pre_x = prex_ref[pl.ds(row, Bp), :]                      # aligned, off-chain
        pre = pre_x + jnp.dot(s.astype(wc.dtype), wc,            # K = H only
                              preferred_element_type=jnp.float32)
        # Single full-width tanh.  i/f/o pre-activations were pre-scaled by 0.5
        # in the wrapper, so sigmoid(z) == 0.5*tanh(z/2) + 0.5 == 0.5*th + 0.5.
        th = jnp.tanh(pre)
        sg = 0.5 * th + 0.5
        i_g = sg[:, 0 * H:1 * H]
        f_g = sg[:, 1 * H:2 * H]
        o_g = sg[:, 2 * H:3 * H]
        g_g = th[:, 3 * H:4 * H]
        c_new = f_g * c + i_g * g_g
        s_new = o_g * jnp.tanh(c_new)     # pre-projection hidden state (Bp, H)
        sseq_ref[pl.ds(row, Bp), :] = s_new
        return s_new, c_new

    unroll = 8 if Tc % 8 == 0 else (4 if Tc % 4 == 0 else (2 if Tc % 2 == 0 else 1))
    s_f, c_f = jax.lax.fori_loop(0, Tc, step, (s_state[...], c_state[...]),
                                 unroll=unroll)
    s_state[...] = s_f
    c_state[...] = c_f

    # (2) Output projection for the whole chunk as ONE batched lane-dense matmul
    #     followed by an unmasked slab store.
    whr = whr_ref[...]
    y_ref[...] = jnp.dot(sseq_ref[...].astype(whr.dtype), whr,
                         preferred_element_type=jnp.float32).astype(y_ref.dtype)


# ------------------------------ wrapper ------------------------------------- #

def _round_up(x, m):
    return -(-x // m) * m


def _pad_to(x, axis, size):
    pad = size - x.shape[axis]
    if pad == 0:
        return x
    widths = [(0, 0)] * x.ndim
    widths[axis] = (0, pad)
    return jnp.pad(x, widths)


def _reorder_gates(w):
    """Permute gate blocks along axis 0 from PyTorch (i, f, g, o) to (i, f, o, g)."""
    H = w.shape[0] // 4
    return jnp.concatenate([w[:2 * H], w[3 * H:4 * H], w[2 * H:3 * H]], axis=0)


def _pick_time_chunk(T, B_pad, target_rows):
    """Choose a time-chunk length Tc (multiple of 8 if < T) and padded T."""
    cand = max(8, (target_rows // B_pad) // 8 * 8)
    if T <= cand:
        return T, T
    return cand, _round_up(T, cand)


def _prep_direction(x_btd, params, d_pad, p_pad, B_pad, T_pad, compute_dtype):
    """Kernel-ready operands for one projected-LSTM direction."""
    w_ih = _reorder_gates(params["w_ih"])     # (4H, Din)
    w_hh = _reorder_gates(params["w_hh"])     # (4H, P)
    bias = _reorder_gates(params["bias"])     # (4H,)
    w_hr = params["w_hr"]                     # (P, H)
    H = w_ih.shape[0] // 4

    # sigmoid(z) = 0.5*tanh(z/2) + 0.5  ->  fold the 1/2 into the i/f/o columns
    # so the kernel needs a single full-width tanh per step.
    scale = jnp.concatenate([jnp.full((3 * H,), 0.5, jnp.float32),
                             jnp.ones((H,), jnp.float32)])

    wx = _pad_to(w_ih.T, 0, d_pad) * scale            # (d_pad, 4H)
    w_comb = (w_hh @ w_hr).T * scale                  # (H, 4H): w_hr folded into w_hh
    whr_t = _pad_to(w_hr.T, 1, p_pad)                 # (H, p_pad)
    b = (bias * scale).reshape(1, 4 * H)              # (1, 4H), stays f32

    x = _pad_to(x_btd, 2, d_pad)                      # (B, T, d_pad)
    x = _pad_to(x, 0, B_pad)                          # (B_pad, T, d_pad)
    x = _pad_to(x, 1, T_pad)                          # (B_pad, T_pad, d_pad)
    # Time-major, batch-minor, flattened so every in-kernel matmul is 2-D and the
    # per-step scratch slices are sublane-aligned.
    # TODO(synk): this transpose is one extra HBM pass over x; folding it into the
    # kernel would need a strided per-step gather, not worth it here.
    x = jnp.transpose(x, (1, 0, 2)).reshape(T_pad * B_pad, d_pad)

    return (x.astype(compute_dtype), wx.astype(compute_dtype),
            w_comb.astype(compute_dtype), b, whr_t.astype(compute_dtype))


def _lstm2_forward(inp, out, params_fwd, params_rev,
                   compute_dtype=jnp.bfloat16, time_chunk_rows=4096):
    """Mirrors LSTM2.forward: returns (inp2, out2)."""
    B, T, d_in = inp.shape
    d_out = out.shape[2]
    H = params_fwd["w_ih"].shape[0] // 4
    assert params_rev["w_ih"].shape[0] // 4 == H, "both LSTMs must share n_hidden"
    G = 4 * H

    d_pad = _round_up(max(d_in, d_out), 8)      # contracted input-feature dim
    p_pad = _round_up(max(d_in, d_out), 128)    # lane-dense projected output dim
    B_pad = _round_up(B, 8)                     # sublane-aligned batch
    Tc, T_pad = _pick_time_chunk(T, B_pad, time_chunk_rows)
    n_chunks = T_pad // Tc
    Tcb = Tc * B_pad

    fwd = _prep_direction(inp, params_fwd, d_pad, p_pad, B_pad, T_pad, compute_dtype)
    rev = _prep_direction(out, params_rev, d_pad, p_pad, B_pad, T_pad, compute_dtype)
    x_s, wx_s, wc_s, b_s, whr_s = [jnp.stack(p) for p in zip(fwd, rev)]

    y = pl.pallas_call(
        _lstm2_kernel,
        out_shape=jax.ShapeDtypeStruct((2, T_pad * B_pad, p_pad), jnp.float32),
        grid=(2, n_chunks),
        in_specs=[
            pl.BlockSpec((None, Tcb, d_pad), lambda d, t: (d, t, 0)),   # x chunk
            pl.BlockSpec((None, d_pad, G), lambda d, t: (d, 0, 0)),     # wx
            pl.BlockSpec((None, H, G), lambda d, t: (d, 0, 0)),         # w_comb
            pl.BlockSpec((None, 1, G), lambda d, t: (d, 0, 0)),         # bias
            pl.BlockSpec((None, H, p_pad), lambda d, t: (d, 0, 0)),     # w_hr.T
        ],
        out_specs=pl.BlockSpec((None, Tcb, p_pad), lambda d, t: (d, t, 0)),
        scratch_shapes=[
            pltpu.VMEM((Tcb, G), jnp.float32),     # hoisted x-projection + bias
            pltpu.VMEM((Tcb, H), jnp.float32),     # per-step states of the chunk
            pltpu.VMEM((B_pad, H), jnp.float32),   # s carried across chunks
            pltpu.VMEM((B_pad, H), jnp.float32),   # c carried across chunks
        ],
        compiler_params=pltpu.CompilerParams(
            dimension_semantics=("parallel", "arbitrary"),
            vmem_limit_bytes=32 * 1024 * 1024,
        ),
    )(x_s, wx_s, wc_s, b_s, whr_s)

    y = y.reshape(2, T_pad, B_pad, p_pad)
    out2 = jnp.transpose(y[0, :T, :B, :d_out], (1, 0, 2))   # (B, T, out_size)
    inp2 = jnp.transpose(y[1, :T, :B, :d_in], (1, 0, 2))    # (B, T, inp_size)
    return inp2, out2


lstm2_forward = jax.jit(_lstm2_forward,
                        static_argnames=("compute_dtype", "time_chunk_rows"))


# --------------------------- pure-JAX reference ----------------------------- #

def lstm_proj_ref(x_btd, w_ih, w_hh, bias, w_hr):
    """Straightforward lax.scan reference using PyTorch weight conventions."""
    B = x_btd.shape[0]
    H = w_ih.shape[0] // 4
    P = w_hr.shape[0]

    def step(carry, x_t):
        h, c = carry
        gates = x_t @ w_ih.T + h @ w_hh.T + bias
        i_g, f_g, g_g, o_g = jnp.split(gates, 4, axis=-1)
        c = jax.nn.sigmoid(f_g) * c + jax.nn.sigmoid(i_g) * jnp.tanh(g_g)
        h = (jax.nn.sigmoid(o_g) * jnp.tanh(c)) @ w_hr.T
        return (h, c), h

    x_tbd = jnp.transpose(x_btd, (1, 0, 2))
    init = (jnp.zeros((B, P), jnp.float32), jnp.zeros((B, H), jnp.float32))
    _, ys = jax.lax.scan(step, init, x_tbd)
    return jnp.transpose(ys, (1, 0, 2))


# ------------------------------ param init ---------------------------------- #

def init_lstm_params(key, input_size, hidden_size, proj_size):
    """PyTorch-style uniform(-1/sqrt(H), 1/sqrt(H)) init; b_ih+b_hh combined."""
    k = 1.0 / jnp.sqrt(hidden_size)
    ks = jax.random.split(key, 5)
    u = lambda kk, shape: jax.random.uniform(kk, shape, jnp.float32, -k, k)
    w_ih = u(ks[0], (4 * hidden_size, input_size))
    w_hh = u(ks[1], (4 * hidden_size, proj_size))
    b_ih = u(ks[2], (4 * hidden_size,))
    b_hh = u(ks[3], (4 * hidden_size,))
    w_hr = u(ks[4], (proj_size, hidden_size))
    return dict(w_ih=w_ih, w_hh=w_hh, bias=b_ih + b_hh, w_hr=w_hr)


# ---------------------------------- main ------------------------------------ #

if __name__ == "__main__":
    INP_SIZE = 16
    OUT_SIZE = 8
    N_HIDDEN = 32
    B, T = 2, 8

    root = jax.random.PRNGKey(0)
    k_inp, k_out, k_fwd, k_rev, k_inp3, k_out3 = jax.random.split(root, 6)

    # self.lstm:         input=INP_SIZE, hidden=N_HIDDEN, proj=OUT_SIZE
    params_fwd = init_lstm_params(k_fwd, INP_SIZE, N_HIDDEN, OUT_SIZE)
    # self.lstm_reverse: input=OUT_SIZE, hidden=N_HIDDEN, proj=INP_SIZE
    params_rev = init_lstm_params(k_rev, OUT_SIZE, N_HIDDEN, INP_SIZE)

    inp = jax.random.normal(k_inp, (B, T, INP_SIZE), jnp.float32)
    out = jax.random.normal(k_out, (B, T, OUT_SIZE), jnp.float32)

    out2_ref = lstm_proj_ref(inp, params_fwd["w_ih"], params_fwd["w_hh"],
                             params_fwd["bias"], params_fwd["w_hr"])
    inp2_ref = lstm_proj_ref(out, params_rev["w_ih"], params_rev["w_hh"],
                             params_rev["bias"], params_rev["w_hr"])

    # 1) f32 compute path: tight check against the lax.scan reference.
    inp2, out2 = lstm2_forward(inp, out, params_fwd, params_rev,
                               compute_dtype=jnp.float32)
    jax.block_until_ready((inp2, out2))
    assert out2.shape == (B, T, OUT_SIZE), out2.shape
    assert inp2.shape == (B, T, INP_SIZE), inp2.shape
    assert jnp.allclose(out2, out2_ref, atol=1e-3, rtol=1e-3)
    assert jnp.allclose(inp2, inp2_ref, atol=1e-3, rtol=1e-3)

    # 2) bf16 matmul-operand path (default perf config); loose numerical check.
    inp2b, out2b = lstm2_forward(inp, out, params_fwd, params_rev,
                                 compute_dtype=jnp.bfloat16)
    jax.block_until_ready((inp2b, out2b))
    assert jnp.allclose(out2b, out2_ref, atol=1e-1, rtol=1e-1)
    assert jnp.allclose(inp2b, inp2_ref, atol=1e-1, rtol=1e-1)

    # 3) Multi-chunk path: forces carried VMEM state + time padding (3 chunks).
    T3 = 20
    inp3 = jax.random.normal(k_inp3, (B, T3, INP_SIZE), jnp.float32)
    out3 = jax.random.normal(k_out3, (B, T3, OUT_SIZE), jnp.float32)
    inp2c, out2c = lstm2_forward(inp3, out3, params_fwd, params_rev,
                                 compute_dtype=jnp.float32, time_chunk_rows=64)
    jax.block_until_ready((inp2c, out2c))
    out2c_ref = lstm_proj_ref(inp3, params_fwd["w_ih"], params_fwd["w_hh"],
                              params_fwd["bias"], params_fwd["w_hr"])
    inp2c_ref = lstm_proj_ref(out3, params_rev["w_ih"], params_rev["w_hh"],
                              params_rev["bias"], params_rev["w_hr"])
    assert jnp.allclose(out2c, out2c_ref, atol=1e-3, rtol=1e-3)
    assert jnp.allclose(inp2c, inp2c_ref, atol=1e-3, rtol=1e-3)

    print("KERNEL_OK")
</pallas_src>

<mosaic_0001>
module attributes {stable_mosaic.version = 11 : i64} {
  func.func @_lstm2_kernel(%arg0: i32, %arg1: i32, %arg2: memref<1x64x16xf32, #tpu.memory_space<vmem>>, %arg3: memref<1x16x128xf32, #tpu.memory_space<vmem>>, %arg4: memref<1x32x128xf32, #tpu.memory_space<vmem>>, %arg5: memref<1x1x128xf32, #tpu.memory_space<vmem>>, %arg6: memref<1x32x128xf32, #tpu.memory_space<vmem>>, %arg7: memref<1x64x128xf32, #tpu.memory_space<vmem>>, %arg8: memref<64x128xf32, #tpu.memory_space<vmem>>, %arg9: memref<64x32xf32, #tpu.memory_space<vmem>>, %arg10: memref<8x32xf32, #tpu.memory_space<vmem>>, %arg11: memref<8x32xf32, #tpu.memory_space<vmem>>) attributes {dimension_semantics = [#tpu.dimension_semantics<parallel>, #tpu.dimension_semantics<arbitrary>], iteration_bounds = array<i64: 2, 1>, scalar_prefetch = 0 : i64, scratch_operands = 4 : i64, tpu.core_type = #tpu.core_type<tc>, window_params = [{transform_indices = @transform_0, window_bounds = array<i64: 1, 64, 16>}, {transform_indices = @transform_1, window_bounds = array<i64: 1, 16, 128>}, {transform_indices = @transform_2, window_bounds = array<i64: 1, 32, 128>}, {transform_indices = @transform_3, window_bounds = array<i64: 1, 1, 128>}, {transform_indices = @transform_4, window_bounds = array<i64: 1, 32, 128>}, {transform_indices = @transform_5, window_bounds = array<i64: 1, 64, 128>}]} {
    %c0_i32 = arith.constant 0 : i32
    %0 = arith.cmpi eq, %arg1, %c0_i32 : i32
    %1 = arith.extui %0 : i1 to i32
    %c0_i32_0 = arith.constant 0 : i32
    %2 = arith.cmpi ne, %1, %c0_i32_0 : i32
    scf.if %2 {
      %cst_80 = arith.constant 0.000000e+00 : f32
      %202 = vector.broadcast %cst_80 : f32 to vector<8x32xf32>
      %c0_81 = arith.constant 0 : index
      %c0_82 = arith.constant 0 : index
      %203 = vector.load %arg10[%c0_81, %c0_82] : memref<8x32xf32, #tpu.memory_space<vmem>>, vector<8x32xf32>
      tpu.vector_store %arg10[%c0_81, %c0_82], %202 {strides = array<i32>} : memref<8x32xf32, #tpu.memory_space<vmem>>, vector<8x32xf32>,
      %cst_83 = arith.constant 0.000000e+00 : f32
      %204 = vector.broadcast %cst_83 : f32 to vector<8x32xf32>
      %c0_84 = arith.constant 0 : index
      %c0_85 = arith.constant 0 : index
      %205 = vector.load %arg11[%c0_84, %c0_85] : memref<8x32xf32, #tpu.memory_space<vmem>>, vector<8x32xf32>
      tpu.vector_store %arg11[%c0_84, %c0_85], %204 {strides = array<i32>} : memref<8x32xf32, #tpu.memory_space<vmem>>, vector<8x32xf32>,
    } else {
    }
    %c0 = arith.constant 0 : index
    %c0_1 = arith.constant 0 : index
    %c0_2 = arith.constant 0 : index
    %3 = vector.load %arg2[%c0, %c0_1, %c0_2] : memref<1x64x16xf32, #tpu.memory_space<vmem>>, vector<1x64x16xf32>
    %4 = vector.shape_cast %3 : vector<1x64x16xf32> to vector<64x16xf32>
    %c0_3 = arith.constant 0 : index
    %c0_4 = arith.constant 0 : index
    %c0_5 = arith.constant 0 : index
    %5 = vector.load %arg3[%c0_3, %c0_4, %c0_5] : memref<1x16x128xf32, #tpu.memory_space<vmem>>, vector<1x16x128xf32>
    %6 = vector.shape_cast %5 : vector<1x16x128xf32> to vector<16x128xf32>
    %cst = arith.constant dense<0.000000e+00> : vector<64x128xf32>
    %7 = tpu.matmul %4, %6, %cst {dimension_numbers = #tpu.dot_dimension_numbers<[1], [0], [0], [1], [0, 0, 1, 1], [], []>} : vector<64x16xf32>, vector<16x128xf32>, vector<64x128xf32> -> vector<64x128xf32>
    %c0_6 = arith.constant 0 : index
    %c0_7 = arith.constant 0 : index
    %c0_8 = arith.constant 0 : index
    %8 = vector.load %arg5[%c0_6, %c0_7, %c0_8] : memref<1x1x128xf32, #tpu.memory_space<vmem>>, vector<1x1x128xf32>
    %9 = vector.shape_cast %8 : vector<1x1x128xf32> to vector<1x128xf32>
    %10 = vector.broadcast %9 : vector<1x128xf32> to vector<64x128xf32>
    %11 = arith.addf %7, %10 : vector<64x128xf32>
    %c0_9 = arith.constant 0 : index
    %c0_10 = arith.constant 0 : index
    %12 = vector.load %arg8[%c0_9, %c0_10] : memref<64x128xf32, #tpu.memory_space<vmem>>, vector<64x128xf32>
    tpu.vector_store %arg8[%c0_9, %c0_10], %11 {strides = array<i32>} : memref<64x128xf32, #tpu.memory_space<vmem>>, vector<64x128xf32>,
    %c0_11 = arith.constant 0 : index
    %c0_12 = arith.constant 0 : index
    %c0_13 = arith.constant 0 : index
    %13 = vector.load %arg4[%c0_11, %c0_12, %c0_13] : memref<1x32x128xf32, #tpu.memory_space<vmem>>, vector<1x32x128xf32>
    %14 = vector.shape_cast %13 : vector<1x32x128xf32> to vector<32x128xf32>
    %c0_14 = arith.constant 0 : index
    %c0_15 = arith.constant 0 : index
    %15 = vector.load %arg10[%c0_14, %c0_15] : memref<8x32xf32, #tpu.memory_space<vmem>>, vector<8x32xf32>
    %c0_16 = arith.constant 0 : index
    %c0_17 = arith.constant 0 : index
    %16 = vector.load %arg11[%c0_16, %c0_17] : memref<8x32xf32, #tpu.memory_space<vmem>>, vector<8x32xf32>
    %c0_i32_18 = arith.constant 0 : i32
    %c8_i32 = arith.constant 8 : i32
    %17 = arith.muli %c0_i32_18, %c8_i32 : i32
    %18 = tpu.assume_multiple %17, 8 : i32
    %19 = arith.index_cast %18 : i32 to index
    %c0_19 = arith.constant 0 : index
    %20 = vector.load %arg8[%19, %c0_19] : memref<64x128xf32, #tpu.memory_space<vmem>>, vector<8x128xf32>
    %cst_20 = arith.constant dense<0.000000e+00> : vector<8x128xf32>
    %21 = tpu.matmul %15, %14, %cst_20 {dimension_numbers = #tpu.dot_dimension_numbers<[1], [0], [0], [1], [0, 0, 1, 1], [], []>} : vector<8x32xf32>, vector<32x128xf32>, vector<8x128xf32> -> vector<8x128xf32>
    %22 = arith.addf %20, %21 : vector<8x128xf32>
    %23 = math.tanh %22 : vector<8x128xf32>
    %cst_21 = arith.constant 5.000000e-01 : f32
    %24 = vector.broadcast %cst_21 : f32 to vector<8x128xf32>
    %25 = arith.mulf %24, %23 : vector<8x128xf32>
    %cst_22 = arith.constant 5.000000e-01 : f32
    %26 = vector.broadcast %cst_22 : f32 to vector<8x128xf32>
    %27 = arith.addf %25, %26 : vector<8x128xf32>
    %28 = vector.extract_strided_slice %27 {offsets = [0, 0], sizes = [8, 32], strides = [1, 1]} : vector<8x128xf32> to vector<8x32xf32>
    %29 = vector.extract_strided_slice %27 {offsets = [0, 32], sizes = [8, 32], strides = [1, 1]} : vector<8x128xf32> to vector<8x32xf32>
    %30 = vector.extract_strided_slice %27 {offsets = [0, 64], sizes = [8, 32], strides = [1, 1]} : vector<8x128xf32> to vector<8x32xf32>
    %31 = vector.extract_strided_slice %23 {offsets = [0, 96], sizes = [8, 32], strides = [1, 1]} : vector<8x128xf32> to vector<8x32xf32>
    %32 = arith.mulf %29, %16 : vector<8x32xf32>
    %33 = arith.mulf %28, %31 : vector<8x32xf32>
    %34 = arith.addf %32, %33 : vector<8x32xf32>
    %35 = math.tanh %34 : vector<8x32xf32>
    %36 = arith.mulf %30, %35 : vector<8x32xf32>
    %37 = arith.index_cast %18 : i32 to index
    %c0_23 = arith.constant 0 : index
    %38 = vector.load %arg9[%37, %c0_23] : memref<64x32xf32, #tpu.memory_space<vmem>>, vector<8x32xf32>
    tpu.vector_store %arg9[%37, %c0_23], %36 {strides = array<i32>} : memref<64x32xf32, #tpu.memory_space<vmem>>, vector<8x32xf32>,
    %c1_i32 = arith.constant 1 : i32
    %c8_i32_24 = arith.constant 8 : i32
    %39 = arith.muli %c1_i32, %c8_i32_24 : i32
    %40 = tpu.assume_multiple %39, 8 : i32
    %41 = arith.index_cast %40 : i32 to index
    %c0_25 = arith.constant 0 : index
    %42 = vector.load %arg8[%41, %c0_25] : memref<64x128xf32, #tpu.memory_space<vmem>>, vector<8x128xf32>
    %cst_26 = arith.constant dense<0.000000e+00> : vector<8x128xf32>
    %43 = tpu.matmul %36, %14, %cst_26 {dimension_numbers = #tpu.dot_dimension_numbers<[1], [0], [0], [1], [0, 0, 1, 1], [], []>} : vector<8x32xf32>, vector<32x128xf32>, vector<8x128xf32> -> vector<8x128xf32>
    %44 = arith.addf %42, %43 : vector<8x128xf32>
    %45 = math.tanh %44 : vector<8x128xf32>
    %cst_27 = arith.constant 5.000000e-01 : f32
    %46 = vector.broadcast %cst_27 : f32 to vector<8x128xf32>
    %47 = arith.mulf %46, %45 : vector<8x128xf32>
    %cst_28 = arith.constant 5.000000e-01 : f32
    %48 = vector.broadcast %cst_28 : f32 to vector<8x128xf32>
    %49 = arith.addf %47, %48 : vector<8x128xf32>
    %50 = vector.extract_strided_slice %49 {offsets = [0, 0], sizes = [8, 32], strides = [1, 1]} : vector<8x128xf32> to vector<8x32xf32>
    %51 = vector.extract_strided_slice %49 {offsets = [0, 32], sizes = [8, 32], strides = [1, 1]} : vector<8x128xf32> to vector<8x32xf32>
    %52 = vector.extract_strided_slice %49 {offsets = [0, 64], sizes = [8, 32], strides = [1, 1]} : vector<8x128xf32> to vector<8x32xf32>
    %53 = vector.extract_strided_slice %45 {offsets = [0, 96], sizes = [8, 32], strides = [1, 1]} : vector<8x128xf32> to vector<8x32xf32>
    %54 = arith.mulf %51, %34 : vector<8x32xf32>
    %55 = arith.mulf %50, %53 : vector<8x32xf32>
    %56 = arith.addf %54, %55 : vector<8x32xf32>
    %57 = math.tanh %56 : vector<8x32xf32>
    %58 = arith.mulf %52, %57 : vector<8x32xf32>
    %59 = arith.index_cast %40 : i32 to index
    %c0_29 = arith.constant 0 : index
    %60 = vector.load %arg9[%59, %c0_29] : memref<64x32xf32, #tpu.memory_space<vmem>>, vector<8x32xf32>
    tpu.vector_store %arg9[%59, %c0_29], %58 {strides = array<i32>} : memref<64x32xf32, #tpu.memory_space<vmem>>, vector<8x32xf32>,
    %c2_i32 = arith.constant 2 : i32
    %c8_i32_30 = arith.constant 8 : i32
    %61 = arith.muli %c2_i32, %c8_i32_30 : i32
    %62 = tpu.assume_multiple %61, 8 : i32
    %63 = arith.index_cast %62 : i32 to index
    %c0_31 = arith.constant 0 : index
    %64 = vector.load %arg8[%63, %c0_31] : memref<64x128xf32, #tpu.memory_space<vmem>>, vector<8x128xf32>
    %cst_32 = arith.constant dense<0.000000e+00> : vector<8x128xf32>
    %65 = tpu.matmul %58, %14, %cst_32 {dimension_numbers = #tpu.dot_dimension_numbers<[1], [0], [0], [1], [0, 0, 1, 1], [], []>} : vector<8x32xf32>, vector<32x128xf32>, vector<8x128xf32> -> vector<8x128xf32>
    %66 = arith.addf %64, %65 : vector<8x128xf32>
    %67 = math.tanh %66 : vector<8x128xf32>
    %cst_33 = arith.constant 5.000000e-01 : f32
    %68 = vector.broadcast %cst_33 : f32 to vector<8x128xf32>
    %69 = arith.mulf %68, %67 : vector<8x128xf32>
    %cst_34 = arith.constant 5.000000e-01 : f32
    %70 = vector.broadcast %cst_34 : f32 to vector<8x128xf32>
    %71 = arith.addf %69, %70 : vector<8x128xf32>
    %72 = vector.extract_strided_slice %71 {offsets = [0, 0], sizes = [8, 32], strides = [1, 1]} : vector<8x128xf32> to vector<8x32xf32>
    %73 = vector.extract_strided_slice %71 {offsets = [0, 32], sizes = [8, 32], strides = [1, 1]} : vector<8x128xf32> to vector<8x32xf32>
    %74 = vector.extract_strided_slice %71 {offsets = [0, 64], sizes = [8, 32], strides = [1, 1]} : vector<8x128xf32> to vector<8x32xf32>
    %75 = vector.extract_strided_slice %67 {offsets = [0, 96], sizes = [8, 32], strides = [1, 1]} : vector<8x128xf32> to vector<8x32xf32>
    %76 = arith.mulf %73, %56 : vector<8x32xf32>
    %77 = arith.mulf %72, %75 : vector<8x32xf32>
    %78 = arith.addf %76, %77 : vector<8x32xf32>
    %79 = math.tanh %78 : vector<8x32xf32>
    %80 = arith.mulf %74, %79 : vector<8x32xf32>
    %81 = arith.index_cast %62 : i32 to index
    %c0_35 = arith.constant 0 : index
    %82 = vector.load %arg9[%81, %c0_35] : memref<64x32xf32, #tpu.memory_space<vmem>>, vector<8x32xf32>
    tpu.vector_store %arg9[%81, %c0_35], %80 {strides = array<i32>} : memref<64x32xf32, #tpu.memory_space<vmem>>, vector<8x32xf32>,
    %c3_i32 = arith.constant 3 : i32
    %c8_i32_36 = arith.constant 8 : i32
    %83 = arith.muli %c3_i32, %c8_i32_36 : i32
    %84 = tpu.assume_multiple %83, 8 : i32
    %85 = arith.index_cast %84 : i32 to index
    %c0_37 = arith.constant 0 : index
    %86 = vector.load %arg8[%85, %c0_37] : memref<64x128xf32, #tpu.memory_space<vmem>>, vector<8x128xf32>
    %cst_38 = arith.constant dense<0.000000e+00> : vector<8x128xf32>
    %87 = tpu.matmul %80, %14, %cst_38 {dimension_numbers = #tpu.dot_dimension_numbers<[1], [0], [0], [1], [0, 0, 1, 1], [], []>} : vector<8x32xf32>, vector<32x128xf32>, vector<8x128xf32> -> vector<8x128xf32>
    %88 = arith.addf %86, %87 : vector<8x128xf32>
    %89 = math.tanh %88 : vector<8x128xf32>
    %cst_39 = arith.constant 5.000000e-01 : f32
    %90 = vector.broadcast %cst_39 : f32 to vector<8x128xf32>
    %91 = arith.mulf %90, %89 : vector<8x128xf32>
    %cst_40 = arith.constant 5.000000e-01 : f32
    %92 = vector.broadcast %cst_40 : f32 to vector<8x128xf32>
    %93 = arith.addf %91, %92 : vector<8x128xf32>
    %94 = vector.extract_strided_slice %93 {offsets = [0, 0], sizes = [8, 32], strides = [1, 1]} : vector<8x128xf32> to vector<8x32xf32>
    %95 = vector.extract_strided_slice %93 {offsets = [0, 32], sizes = [8, 32], strides = [1, 1]} : vector<8x128xf32> to vector<8x32xf32>
    %96 = vector.extract_strided_slice %93 {offsets = [0, 64], sizes = [8, 32], strides = [1, 1]} : vector<8x128xf32> to vector<8x32xf32>
    %97 = vector.extract_strided_slice %89 {offsets = [0, 96], sizes = [8, 32], strides = [1, 1]} : vector<8x128xf32> to vector<8x32xf32>
    %98 = arith.mulf %95, %78 : vector<8x32xf32>
    %99 = arith.mulf %94, %97 : vector<8x32xf32>
    %100 = arith.addf %98, %99 : vector<8x32xf32>
    %101 = math.tanh %100 : vector<8x32xf32>
    %102 = arith.mulf %96, %101 : vector<8x32xf32>
    %103 = arith.index_cast %84 : i32 to index
    %c0_41 = arith.constant 0 : index
    %104 = vector.load %arg9[%103, %c0_41] : memref<64x32xf32, #tpu.memory_space<vmem>>, vector<8x32xf32>
    tpu.vector_store %arg9[%103, %c0_41], %102 {strides = array<i32>} : memref<64x32xf32, #tpu.memory_space<vmem>>, vector<8x32xf32>,
    %c4_i32 = arith.constant 4 : i32
    %c8_i32_42 = arith.constant 8 : i32
    %105 = arith.muli %c4_i32, %c8_i32_42 : i32
    %106 = tpu.assume_multiple %105, 8 : i32
    %107 = arith.index_cast %106 : i32 to index
    %c0_43 = arith.constant 0 : index
    %108 = vector.load %arg8[%107, %c0_43] : memref<64x128xf32, #tpu.memory_space<vmem>>, vector<8x128xf32>
    %cst_44 = arith.constant dense<0.000000e+00> : vector<8x128xf32>
    %109 = tpu.matmul %102, %14, %cst_44 {dimension_numbers = #tpu.dot_dimension_numbers<[1], [0], [0], [1], [0, 0, 1, 1], [], []>} : vector<8x32xf32>, vector<32x128xf32>, vector<8x128xf32> -> vector<8x128xf32>
    %110 = arith.addf %108, %109 : vector<8x128xf32>
    %111 = math.tanh %110 : vector<8x128xf32>
    %cst_45 = arith.constant 5.000000e-01 : f32
    %112 = vector.broadcast %cst_45 : f32 to vector<8x128xf32>
    %113 = arith.mulf %112, %111 : vector<8x128xf32>
    %cst_46 = arith.constant 5.000000e-01 : f32
    %114 = vector.broadcast %cst_46 : f32 to vector<8x128xf32>
    %115 = arith.addf %113, %114 : vector<8x128xf32>
    %116 = vector.extract_strided_slice %115 {offsets = [0, 0], sizes = [8, 32], strides = [1, 1]} : vector<8x128xf32> to vector<8x32xf32>
    %117 = vector.extract_strided_slice %115 {offsets = [0, 32], sizes = [8, 32], strides = [1, 1]} : vector<8x128xf32> to vector<8x32xf32>
    %118 = vector.extract_strided_slice %115 {offsets = [0, 64], sizes = [8, 32], strides = [1, 1]} : vector<8x128xf32> to vector<8x32xf32>
    %119 = vector.extract_strided_slice %111 {offsets = [0, 96], sizes = [8, 32], strides = [1, 1]} : vector<8x128xf32> to vector<8x32xf32>
    %120 = arith.mulf %117, %100 : vector<8x32xf32>
    %121 = arith.mulf %116, %119 : vector<8x32xf32>
    %122 = arith.addf %120, %121 : vector<8x32xf32>
    %123 = math.tanh %122 : vector<8x32xf32>
    %124 = arith.mulf %118, %123 : vector<8x32xf32>
    %125 = arith.index_cast %106 : i32 to index
    %c0_47 = arith.constant 0 : index
    %126 = vector.load %arg9[%125, %c0_47] : memref<64x32xf32, #tpu.memory_space<vmem>>, vector<8x32xf32>
    tpu.vector_store %arg9[%125, %c0_47], %124 {strides = array<i32>} : memref<64x32xf32, #tpu.memory_space<vmem>>, vector<8x32xf32>,
    %c5_i32 = arith.constant 5 : i32
    %c8_i32_48 = arith.constant 8 : i32
    %127 = arith.muli %c5_i32, %c8_i32_48 : i32
    %128 = tpu.assume_multiple %127, 8 : i32
    %129 = arith.index_cast %128 : i32 to index
    %c0_49 = arith.constant 0 : index
    %130 = vector.load %arg8[%129, %c0_49] : memref<64x128xf32, #tpu.memory_space<vmem>>, vector<8x128xf32>
    %cst_50 = arith.constant dense<0.000000e+00> : vector<8x128xf32>
    %131 = tpu.matmul %124, %14, %cst_50 {dimension_numbers = #tpu.dot_dimension_numbers<[1], [0], [0], [1], [0, 0, 1, 1], [], []>} : vector<8x32xf32>, vector<32x128xf32>, vector<8x128xf32> -> vector<8x128xf32>
    %132 = arith.addf %130, %131 : vector<8x128xf32>
    %133 = math.tanh %132 : vector<8x128xf32>
    %cst_51 = arith.constant 5.000000e-01 : f32
    %134 = vector.broadcast %cst_51 : f32 to vector<8x128xf32>
    %135 = arith.mulf %134, %133 : vector<8x128xf32>
    %cst_52 = arith.constant 5.000000e-01 : f32
    %136 = vector.broadcast %cst_52 : f32 to vector<8x128xf32>
    %137 = arith.addf %135, %136 : vector<8x128xf32>
    %138 = vector.extract_strided_slice %137 {offsets = [0, 0], sizes = [8, 32], strides = [1, 1]} : vector<8x128xf32> to vector<8x32xf32>
    %139 = vector.extract_strided_slice %137 {offsets = [0, 32], sizes = [8, 32], strides = [1, 1]} : vector<8x128xf32> to vector<8x32xf32>
    %140 = vector.extract_strided_slice %137 {offsets = [0, 64], sizes = [8, 32], strides = [1, 1]} : vector<8x128xf32> to vector<8x32xf32>
    %141 = vector.extract_strided_slice %133 {offsets = [0, 96], sizes = [8, 32], strides = [1, 1]} : vector<8x128xf32> to vector<8x32xf32>
    %142 = arith.mulf %139, %122 : vector<8x32xf32>
    %143 = arith.mulf %138, %141 : vector<8x32xf32>
    %144 = arith.addf %142, %143 : vector<8x32xf32>
    %145 = math.tanh %144 : vector<8x32xf32>
    %146 = arith.mulf %140, %145 : vector<8x32xf32>
    %147 = arith.index_cast %128 : i32 to index
    %c0_53 = arith.constant 0 : index
    %148 = vector.load %arg9[%147, %c0_53] : memref<64x32xf32, #tpu.memory_space<vmem>>, vector<8x32xf32>
    tpu.vector_store %arg9[%147, %c0_53], %146 {strides = array<i32>} : memref<64x32xf32, #tpu.memory_space<vmem>>, vector<8x32xf32>,
    %c6_i32 = arith.constant 6 : i32
    %c8_i32_54 = arith.constant 8 : i32
    %149 = arith.muli %c6_i32, %c8_i32_54 : i32
    %150 = tpu.assume_multiple %149, 8 : i32
    %151 = arith.index_cast %150 : i32 to index
    %c0_55 = arith.constant 0 : index
    %152 = vector.load %arg8[%151, %c0_55] : memref<64x128xf32, #tpu.memory_space<vmem>>, vector<8x128xf32>
    %cst_56 = arith.constant dense<0.000000e+00> : vector<8x128xf32>
    %153 = tpu.matmul %146, %14, %cst_56 {dimension_numbers = #tpu.dot_dimension_numbers<[1], [0], [0], [1], [0, 0, 1, 1], [], []>} : vector<8x32xf32>, vector<32x128xf32>, vector<8x128xf32> -> vector<8x128xf32>
    %154 = arith.addf %152, %153 : vector<8x128xf32>
    %155 = math.tanh %154 : vector<8x128xf32>
    %cst_57 = arith.constant 5.000000e-01 : f32
    %156 = vector.broadcast %cst_57 : f32 to vector<8x128xf32>
    %157 = arith.mulf %156, %155 : vector<8x128xf32>
    %cst_58 = arith.constant 5.000000e-01 : f32
    %158 = vector.broadcast %cst_58 : f32 to vector<8x128xf32>
    %159 = arith.addf %157, %158 : vector<8x128xf32>
    %160 = vector.extract_strided_slice %159 {offsets = [0, 0], sizes = [8, 32], strides = [1, 1]} : vector<8x128xf32> to vector<8x32xf32>
    %161 = vector.extract_strided_slice %159 {offsets = [0, 32], sizes = [8, 32], strides = [1, 1]} : vector<8x128xf32> to vector<8x32xf32>
    %162 = vector.extract_strided_slice %159 {offsets = [0, 64], sizes = [8, 32], strides = [1, 1]} : vector<8x128xf32> to vector<8x32xf32>
    %163 = vector.extract_strided_slice %155 {offsets = [0, 96], sizes = [8, 32], strides = [1, 1]} : vector<8x128xf32> to vector<8x32xf32>
    %164 = arith.mulf %161, %144 : vector<8x32xf32>
    %165 = arith.mulf %160, %163 : vector<8x32xf32>
    %166 = arith.addf %164, %165 : vector<8x32xf32>
    %167 = math.tanh %166 : vector<8x32xf32>
    %168 = arith.mulf %162, %167 : vector<8x32xf32>
    %169 = arith.index_cast %150 : i32 to index
    %c0_59 = arith.constant 0 : index
    %170 = vector.load %arg9[%169, %c0_59] : memref<64x32xf32, #tpu.memory_space<vmem>>, vector<8x32xf32>
    tpu.vector_store %arg9[%169, %c0_59], %168 {strides = array<i32>} : memref<64x32xf32, #tpu.memory_space<vmem>>, vector<8x32xf32>,
    %c7_i32 = arith.constant 7 : i32
    %c8_i32_60 = arith.constant 8 : i32
    %171 = arith.muli %c7_i32, %c8_i32_60 : i32
    %172 = tpu.assume_multiple %171, 8 : i32
    %173 = arith.index_cast %172 : i32 to index
    %c0_61 = arith.constant 0 : index
    %174 = vector.load %arg8[%173, %c0_61] : memref<64x128xf32, #tpu.memory_space<vmem>>, vector<8x128xf32>
    %cst_62 = arith.constant dense<0.000000e+00> : vector<8x128xf32>
    %175 = tpu.matmul %168, %14, %cst_62 {dimension_numbers = #tpu.dot_dimension_numbers<[1], [0], [0], [1], [0, 0, 1, 1], [], []>} : vector<8x32xf32>, vector<32x128xf32>, vector<8x128xf32> -> vector<8x128xf32>
    %176 = arith.addf %174, %175 : vector<8x128xf32>
    %177 = math.tanh %176 : vector<8x128xf32>
    %cst_63 = arith.constant 5.000000e-01 : f32
    %178 = vector.broadcast %cst_63 : f32 to vector<8x128xf32>
    %179 = arith.mulf %178, %177 : vector<8x128xf32>
    %cst_64 = arith.constant 5.000000e-01 : f32
    %180 = vector.broadcast %cst_64 : f32 to vector<8x128xf32>
    %181 = arith.addf %179, %180 : vector<8x128xf32>
    %182 = vector.extract_strided_slice %181 {offsets = [0, 0], sizes = [8, 32], strides = [1, 1]} : vector<8x128xf32> to vector<8x32xf32>
    %183 = vector.extract_strided_slice %181 {offsets = [0, 32], sizes = [8, 32], strides = [1, 1]} : vector<8x128xf32> to vector<8x32xf32>
    %184 = vector.extract_strided_slice %181 {offsets = [0, 64], sizes = [8, 32], strides = [1, 1]} : vector<8x128xf32> to vector<8x32xf32>
    %185 = vector.extract_strided_slice %177 {offsets = [0, 96], sizes = [8, 32], strides = [1, 1]} : vector<8x128xf32> to vector<8x32xf32>
    %186 = arith.mulf %183, %166 : vector<8x32xf32>
    %187 = arith.mulf %182, %185 : vector<8x32xf32>
    %188 = arith.addf %186, %187 : vector<8x32xf32>
    %189 = math.tanh %188 : vector<8x32xf32>
    %190 = arith.mulf %184, %189 : vector<8x32xf32>
    %191 = arith.index_cast %172 : i32 to index
    %c0_65 = arith.constant 0 : index
    %192 = vector.load %arg9[%191, %c0_65] : memref<64x32xf32, #tpu.memory_space<vmem>>, vector<8x32xf32>
    tpu.vector_store %arg9[%191, %c0_65], %190 {strides = array<i32>} : memref<64x32xf32, #tpu.memory_space<vmem>>, vector<8x32xf32>,
    %c8_i32_66 = arith.constant 8 : i32
    %c0_67 = arith.constant 0 : index
    %c0_68 = arith.constant 0 : index
    %193 = vector.load %arg10[%c0_67, %c0_68] : memref<8x32xf32, #tpu.memory_space<vmem>>, vector<8x32xf32>
    tpu.vector_store %arg10[%c0_67, %c0_68], %190 {strides = array<i32>} : memref<8x32xf32, #tpu.memory_space<vmem>>, vector<8x32xf32>,
    %c0_69 = arith.constant 0 : index
    %c0_70 = arith.constant 0 : index
    %194 = vector.load %arg11[%c0_69, %c0_70] : memref<8x32xf32, #tpu.memory_space<vmem>>, vector<8x32xf32>
    tpu.vector_store %arg11[%c0_69, %c0_70], %188 {strides = array<i32>} : memref<8x32xf32, #tpu.memory_space<vmem>>, vector<8x32xf32>,
    %c0_71 = arith.constant 0 : index
    %c0_72 = arith.constant 0 : index
    %c0_73 = arith.constant 0 : index
    %195 = vector.load %arg6[%c0_71, %c0_72, %c0_73] : memref<1x32x128xf32, #tpu.memory_space<vmem>>, vector<1x32x128xf32>
    %196 = vector.shape_cast %195 : vector<1x32x128xf32> to vector<32x128xf32>
    %c0_74 = arith.constant 0 : index
    %c0_75 = arith.constant 0 : index
    %197 = vector.load %arg9[%c0_74, %c0_75] : memref<64x32xf32, #tpu.memory_space<vmem>>, vector<64x32xf32>
    %cst_76 = arith.constant dense<0.000000e+00> : vector<64x128xf32>
    %198 = tpu.matmul %197, %196, %cst_76 {dimension_numbers = #tpu.dot_dimension_numbers<[1], [0], [0], [1], [0, 0, 1, 1], [], []>} : vector<64x32xf32>, vector<32x128xf32>, vector<64x128xf32> -> vector<64x128xf32>
    %c0_77 = arith.constant 0 : index
    %c0_78 = arith.constant 0 : index
    %c0_79 = arith.constant 0 : index
    %199 = vector.load %arg7[%c0_77, %c0_78, %c0_79] : memref<1x64x128xf32, #tpu.memory_space<vmem>>, vector<1x64x128xf32>
    %200 = vector.shape_cast %199 : vector<1x64x128xf32> to vector<64x128xf32>
    %201 = vector.shape_cast %198 : vector<64x128xf32> to vector<1x64x128xf32>
    tpu.vector_store %arg7[%c0_77, %c0_78, %c0_79], %201 {strides = array<i32>} : memref<1x64x128xf32, #tpu.memory_space<vmem>>, vector<1x64x128xf32>,
    return
  }
  func.func @transform_0(%arg0: i32, %arg1: i32) -> (i32, i32, i32) {
    %c0_i32 = arith.constant 0 : i32
    %c0_i32_0 = arith.constant 0 : i32
    return %arg0, %arg1, %c0_i32 : i32, i32, i32
  }
  func.func @transform_1(%arg0: i32, %arg1: i32) -> (i32, i32, i32) {
    %c0_i32 = arith.constant 0 : i32
    %c0_i32_0 = arith.constant 0 : i32
    %c0_i32_1 = arith.constant 0 : i32
    return %arg0, %c0_i32, %c0_i32_0 : i32, i32, i32
  }
  func.func @transform_2(%arg0: i32, %arg1: i32) -> (i32, i32, i32) {
    %c0_i32 = arith.constant 0 : i32
    %c0_i32_0 = arith.constant 0 : i32
    %c0_i32_1 = arith.constant 0 : i32
    return %arg0, %c0_i32, %c0_i32_0 : i32, i32, i32
  }
  func.func @transform_3(%arg0: i32, %arg1: i32) -> (i32, i32, i32) {
    %c0_i32 = arith.constant 0 : i32
    %c0_i32_0 = arith.constant 0 : i32
    %c0_i32_1 = arith.constant 0 : i32
    return %arg0, %c0_i32, %c0_i32_0 : i32, i32, i32
  }
  func.func @transform_4(%arg0: i32, %arg1: i32) -> (i32, i32, i32) {
    %c0_i32 = arith.constant 0 : i32
    %c0_i32_0 = arith.constant 0 : i32
    %c0_i32_1 = arith.constant 0 : i32
    return %arg0, %c0_i32, %c0_i32_0 : i32, i32, i32
  }
  func.func @transform_5(%arg0: i32, %arg1: i32) -> (i32, i32, i32) {
    %c0_i32 = arith.constant 0 : i32
    %c0_i32_0 = arith.constant 0 : i32
    return %arg0, %arg1, %c0_i32 : i32, i32, i32
  }
}

</mosaic_0001>

<llo_original>
// kernel: _lstm2_forward.1
$region0: #{_lstm2_forward.1}
  #allocation0 [shape = 'u32[]', space=smem, size = 0x4, offset = 0x4, fixed_abs, tag = 'smem constant byte address 0x4 - core index']
  #allocation1 [shape = 'u32[144,128]{1,0:T(1,128)}', space=vmem, size = 0x12000, scoped, tag = 'internal scratch']
  #allocation2 [shape = 'f32[64,128]{1,0:T(8,128)}', space=vmem, size = 0x8000, scoped, tag = 'scratch operand']
  #allocation3 [shape = 'f32[64,32]{1,0:T(8,128)}', space=vmem, size = 0x8000, scoped, tag = 'scratch operand']
  #allocation4 [shape = 'f32[8,32]{1,0:T(8,128)}', space=vmem, size = 0x1000, scoped, tag = 'scratch operand']
  #allocation5 [shape = 'f32[8,32]{1,0:T(8,128)}', space=vmem, size = 0x1000, scoped, tag = 'scratch operand']
  %s0 = inlined_call_operand.vmem [shape: f32[2,64,16], index: 0, kind: input, shape index: {}]
  %s1 = inlined_call_operand.vmem [shape: f32[2,16,128], index: 1, kind: input, shape index: {}]
  %s2 = inlined_call_operand.vmem [shape: f32[2,32,128], index: 2, kind: input, shape index: {}]
  %s3 = inlined_call_operand.vmem [shape: f32[2,1,128], index: 3, kind: input, shape index: {}]
  %s4 = inlined_call_operand.vmem [shape: f32[2,32,128], index: 4, kind: input, shape index: {}]
  %s5 = inlined_call_operand.vmem [shape: f32[2,64,128], index: 5, kind: output, shape index: {}]
  %s6 = sld [smem:[#allocation0]]
  $region57: #{_lstm2_forward.1} parent=0
    _
  %s8 = ssub.s32 1, %s6
  %s9 = scalar_select 0, %s8, %s6
  loop: start=0, step=1, limit=4
  $region2: #{_lstm2_forward.1} parent=0 // loop_pre_header
    _
  $region3: #{_lstm2_forward.1} parent=0 // loop_header
    %s11 = sphi 0, %s15
    %p12 = scmp.ge.s32.totalorder %s11, 4
    %s18 = sphi 0, %s30
    %s19 = sphi 0, %s26
    %s20 = sphi 0, %s18
    %s21 = sphi 0, %s19
    %s22 = sphi 0, %s20
    %s23 = sphi 0, %s21
    %s35 = sphi 0, %s37
    %s38 = sphi 0, %s35
    %s39 = sphi 0, %s38
    %s55 = sphi 0, %s39
    %s61 = sphi 0, %s63
    %s64 = sphi 0, %s61
    %s65 = sphi 0, %s64
    %s81 = sphi 0, %s65
    %s87 = sphi 0, %s89
    %s90 = sphi 0, %s87
    %s91 = sphi 0, %s90
    %s107 = sphi 0, %s91
    %s113 = sphi 0, %s115
    %s116 = sphi 0, %s113
    %s117 = sphi 0, %s116
    %s133 = sphi 0, %s117
    %s139 = sphi 0, %s141
    %s142 = sphi 0, %s139
    %s143 = sphi 0, %s142
    %s159 = sphi 0, %s143
    %s167 = sphi 0, %s169
    %s170 = sphi 0, %s167
    %s171 = sphi 0, %s170
    %s187 = sphi 0, %s171
  $region4: #{_lstm2_forward.1} parent=0 // loop_header_branch
    %14 = sbr.rel (%p12) target = $region8
  $region5: #{_lstm2_forward.1} parent=0 // loop_body
    %s16 = ssub.s32 %s11, 1
    %s17 = ssub.s32 %s11, 2
    %s24 = sadd.s32 1, %s19
    %p25 = scmp.ge.s32.totalorder %s24, 1
    %s26 = scalar_select %p25, 0, %s24
    %s27 = sadd.s32 1, %s18
    %s28 = scalar_select %p25, %s27, %s18
    %p29 = scmp.ge.s32.totalorder %s28, 2
    %s30 = scalar_select %p29, 0, %s28
    %s31 = ssub.s32 %s18, %s30
    %s32 = ssub.s32 %s19, %s26
    %s33 = sor.u32 %s31, %s32
    %p34 = scmp.eq.s32.totalorder %s33, 0
    %s36 = sadd.s32 %s35, 1
    %s37 = scalar_select %p34, %s35, %s36
    %p40 = pneg %p34
    %p41 = scmp.eq.s32.totalorder %s11, 1
    %p42 = por %p40, %p41
    %p43 = scmp.ne.s32.totalorder %s35, %s38
    %p44 = scmp.eq.s32.totalorder %s11, 0
    %p45 = por %p43, %p44
    %p46 = scmp.ne.s32.totalorder %s35, %s38
    %p47 = scmp.eq.s32.totalorder %s16, 1
    %p48 = por %p46, %p47
    %p49 = scmp.ne.s32.totalorder %s38, %s39
    %p50 = scmp.eq.s32.totalorder %s16, 0
    %p51 = por %p49, %p50
    %p52 = scmp.ne.s32.totalorder %s38, %s39
    %p53 = scmp.eq.s32.totalorder %s17, 1
    %p54 = por %p52, %p53
    %p56 = scmp.ne.s32.totalorder %s39, %s55
    %p57 = scmp.eq.s32.totalorder %s17, 0
    %p58 = por %p56, %p57
    %s59 = ssub.s32 %s18, %s30
    %p60 = scmp.eq.s32.totalorder %s59, 0
    %s62 = sadd.s32 %s61, 1
    %s63 = scalar_select %p60, %s61, %s62
    %p66 = pneg %p60
    %p67 = scmp.eq.s32.totalorder %s11, 1
    %p68 = por %p66, %p67
    %p69 = scmp.ne.s32.totalorder %s61, %s64
    %p70 = scmp.eq.s32.totalorder %s11, 0
    %p71 = por %p69, %p70
    %p72 = scmp.ne.s32.totalorder %s61, %s64
    %p73 = scmp.eq.s32.totalorder %s16, 1
    %p74 = por %p72, %p73
    %p75 = scmp.ne.s32.totalorder %s64, %s65
    %p76 = scmp.eq.s32.totalorder %s16, 0
    %p77 = por %p75, %p76
    %p78 = scmp.ne.s32.totalorder %s64, %s65
    %p79 = scmp.eq.s32.totalorder %s17, 1
    %p80 = por %p78, %p79
    %p82 = scmp.ne.s32.totalorder %s65, %s81
    %p83 = scmp.eq.s32.totalorder %s17, 0
    %p84 = por %p82, %p83
    %s85 = ssub.s32 %s18, %s30
    %p86 = scmp.eq.s32.totalorder %s85, 0
    %s88 = sadd.s32 %s87, 1
    %s89 = scalar_select %p86, %s87, %s88
    %p92 = pneg %p86
    %p93 = scmp.eq.s32.totalorder %s11, 1
    %p94 = por %p92, %p93
    %p95 = scmp.ne.s32.totalorder %s87, %s90
    %p96 = scmp.eq.s32.totalorder %s11, 0
    %p97 = por %p95, %p96
    %p98 = scmp.ne.s32.totalorder %s87, %s90
    %p99 = scmp.eq.s32.totalorder %s16, 1
    %p100 = por %p98, %p99
    %p101 = scmp.ne.s32.totalorder %s90, %s91
    %p102 = scmp.eq.s32.totalorder %s16, 0
    %p103 = por %p101, %p102
    %p104 = scmp.ne.s32.totalorder %s90, %s91
    %p105 = scmp.eq.s32.totalorder %s17, 1
    %p106 = por %p104, %p105
    %p108 = scmp.ne.s32.totalorder %s91, %s107
    %p109 = scmp.eq.s32.totalorder %s17, 0
    %p110 = por %p108, %p109
    %s111 = ssub.s32 %s18, %s30
    %p112 = scmp.eq.s32.totalorder %s111, 0
    %s114 = sadd.s32 %s113, 1
    %s115 = scalar_select %p112, %s113, %s114
    %p118 = pneg %p112
    %p119 = scmp.eq.s32.totalorder %s11, 1
    %p120 = por %p118, %p119
    %p121 = scmp.ne.s32.totalorder %s113, %s116
    %p122 = scmp.eq.s32.totalorder %s11, 0
    %p123 = por %p121, %p122
    %p124 = scmp.ne.s32.totalorder %s113, %s116
    %p125 = scmp.eq.s32.totalorder %s16, 1
    %p126 = por %p124, %p125
    %p127 = scmp.ne.s32.totalorder %s116, %s117
    %p128 = scmp.eq.s32.totalorder %s16, 0
    %p129 = por %p127, %p128
    %p130 = scmp.ne.s32.totalorder %s116, %s117
    %p131 = scmp.eq.s32.totalorder %s17, 1
    %p132 = por %p130, %p131
    %p134 = scmp.ne.s32.totalorder %s117, %s133
    %p135 = scmp.eq.s32.totalorder %s17, 0
    %p136 = por %p134, %p135
    %s137 = ssub.s32 %s18, %s30
    %p138 = scmp.eq.s32.totalorder %s137, 0
    %s140 = sadd.s32 %s139, 1
    %s141 = scalar_select %p138, %s139, %s140
    %p144 = pneg %p138
    %p145 = scmp.eq.s32.totalorder %s11, 1
    %p146 = por %p144, %p145
    %p147 = scmp.ne.s32.totalorder %s139, %s142
    %p148 = scmp.eq.s32.totalorder %s11, 0
    %p149 = por %p147, %p148
    %p150 = scmp.ne.s32.totalorder %s139, %s142
    %p151 = scmp.eq.s32.totalorder %s16, 1
    %p152 = por %p150, %p151
    %p153 = scmp.ne.s32.totalorder %s142, %s143
    %p154 = scmp.eq.s32.totalorder %s16, 0
    %p155 = por %p153, %p154
    %p156 = scmp.ne.s32.totalorder %s142, %s143
    %p157 = scmp.eq.s32.totalorder %s17, 1
    %p158 = por %p156, %p157
    %p160 = scmp.ne.s32.totalorder %s143, %s159
    %p161 = scmp.eq.s32.totalorder %s17, 0
    %p162 = por %p160, %p161
    %s163 = ssub.s32 %s18, %s30
    %s164 = ssub.s32 %s19, %s26
    %s165 = sor.u32 %s163, %s164
    %p166 = scmp.eq.s32.totalorder %s165, 0
    %s168 = sadd.s32 %s167, 1
    %s169 = scalar_select %p166, %s167, %s168
    %p172 = pneg %p166
    %p173 = scmp.eq.s32.totalorder %s11, 1
    %p174 = por %p172, %p173
    %p175 = scmp.ne.s32.totalorder %s167, %s170
    %p176 = scmp.eq.s32.totalorder %s11, 0
    %p177 = por %p175, %p176
    %p178 = scmp.ne.s32.totalorder %s167, %s170
    %p179 = scmp.eq.s32.totalorder %s16, 1
    %p180 = por %p178, %p179
    %p181 = scmp.ne.s32.totalorder %s170, %s171
    %p182 = scmp.eq.s32.totalorder %s16, 0
    %p183 = por %p181, %p182
    %p184 = scmp.ne.s32.totalorder %s170, %s171
    %p185 = scmp.eq.s32.totalorder %s17, 1
    %p186 = por %p184, %p185
    %p188 = scmp.ne.s32.totalorder %s171, %s187
    %p189 = scmp.eq.s32.totalorder %s17, 0
    %p190 = por %p188, %p189
    %p191 = scmp.le.s32.totalorder 1, %s11
    %p192 = scmp.lt.s32.totalorder %s11, 3
    %p193 = pnand %p191, %p192
    %p194 = pneg %p193
    // Predicated region
    $region9: #{_lstm2_forward.1} parent=5 // pred_check
      _
    $region10: #{_lstm2_forward.1} parent=5 // pred_check_branch
      %196 = sbr.rel (%p193) target = $region12
    $region11: #{_lstm2_forward.1} parent=5 // pred_region
      %s197 = ssub.s32 %s11, 1
    $region12: #{_lstm2_forward.1} parent=5 // pred_fallthru
      _
    %p198 = scmp.lt.s32.totalorder %s11, 2
    // Predicated region
    $region13: #{_lstm2_forward.1} parent=5 // pred_check
      %p199 = pneg %p198
    $region14: #{_lstm2_forward.1} parent=5 // pred_check_branch
      %201 = sbr.rel (%p199) target = $region16
    $region15: #{_lstm2_forward.1} parent=5 // pred_region
      // Predicated region
      $region17: #{_lstm2_forward.1} parent=15 // pred_check
        %p202 = pneg %p45
      $region18: #{_lstm2_forward.1} parent=15 // pred_check_branch
        %204 = sbr.rel (%p202) target = $region20
      $region19: #{_lstm2_forward.1} parent=15 // pred_region
        %s205 = smul.u32 8, %s19
        %p206 = scmp.lt.s32.totalorder %s18, 1
        %s207 = scalar_select %p206, %s18, 1
        %p208 = scmp.lt.s32.totalorder %s205, 7
        %s209 = scalar_select %p208, %s205, 7
        %s210 = smul.addr %s207, 8
        %s211 = sadd.s32 %s209, %s210
        %s212 = smul.addr %s211, 8
        %s213 = scalar_lea.vmem %s0, %s212
        %s214 = smul.u32 8, %s19
      $region20: #{_lstm2_forward.1} parent=15 // pred_fallthru
        _
      // Predicated region
      $region21: #{_lstm2_forward.1} parent=15 // pred_check
        %p215 = pneg %p71
      $region22: #{_lstm2_forward.1} parent=15 // pred_check_branch
        %217 = sbr.rel (%p215) target = $region24
      $region23: #{_lstm2_forward.1} parent=15 // pred_region
        %p218 = scmp.lt.s32.totalorder %s18, 1
        %s219 = scalar_select %p218, %s18, 1
        %s220 = smul.addr %s219, 2
        %s221 = smul.addr %s220, 8
        %s222 = scalar_lea.vmem %s1, %s221
      $region24: #{_lstm2_forward.1} parent=15 // pred_fallthru
        _
      // Predicated region
      $region25: #{_lstm2_forward.1} parent=15 // pred_check
        %p223 = pneg %p97
      $region26: #{_lstm2_forward.1} parent=15 // pred_check_branch
        %225 = sbr.rel (%p223) target = $region28
      $region27: #{_lstm2_forward.1} parent=15 // pred_region
        %p226 = scmp.lt.s32.totalorder %s18, 1
        %s227 = scalar_select %p226, %s18, 1
        %s228 = smul.addr %s227, 4
        %s229 = smul.addr %s228, 8
        %s230 = scalar_lea.vmem %s2, %s229
      $region28: #{_lstm2_forward.1} parent=15 // pred_fallthru
        _
      // Predicated region
      $region29: #{_lstm2_forward.1} parent=15 // pred_check
        %p231 = pneg %p123
      $region30: #{_lstm2_forward.1} parent=15 // pred_check_branch
        %233 = sbr.rel (%p231) target = $region32
      $region31: #{_lstm2_forward.1} parent=15 // pred_region
        %p234 = scmp.lt.s32.totalorder %s18, 1
        %s235 = scalar_select %p234, %s18, 1
        %s236 = scalar_lea.vmem %s3, %s235
      $region32: #{_lstm2_forward.1} parent=15 // pred_fallthru
        _
      // Predicated region
      $region33: #{_lstm2_forward.1} parent=15 // pred_check
        %p237 = pneg %p149
      $region34: #{_lstm2_forward.1} parent=15 // pred_check_branch
        %239 = sbr.rel (%p237) target = $region36
      $region35: #{_lstm2_forward.1} parent=15 // pred_region
        %p240 = scmp.lt.s32.totalorder %s18, 1
        %s241 = scalar_select %p240, %s18, 1
        %s242 = smul.addr %s241, 4
        %s243 = smul.addr %s242, 8
        %s244 = scalar_lea.vmem %s4, %s243
      $region36: #{_lstm2_forward.1} parent=15 // pred_fallthru
        _
    $region16: #{_lstm2_forward.1} parent=5 // pred_fallthru
      _
    %p245 = scmp.le.s32.totalorder 1, %s11
    %p246 = scmp.lt.s32.totalorder %s11, 3
    %p247 = pnand %p245, %p246
    %p248 = pneg %p247
    // Predicated region
    $region37: #{_lstm2_forward.1} parent=5 // pred_check
      _
    $region38: #{_lstm2_forward.1} parent=5 // pred_check_branch
      %250 = sbr.rel (%p247) target = $region40
    $region39: #{_lstm2_forward.1} parent=5 // pred_region
      %s251 = ssub.s32 %s11, 1
      %s252 = smul.u32 8, %s21
      %p253 = scmp.lt.s32.totalorder %s20, 1
      %s254 = scalar_select %p253, %s20, 1
      %p255 = scmp.lt.s32.totalorder %s252, 7
      %s256 = scalar_select %p255, %s252, 7
      %s257 = smul.addr %s254, 8
      %s258 = sadd.s32 %s256, %s257
      %s259 = smul.addr %s258, 8
      %s260 = scalar_lea.vmem %s0, %s259
      %p261 = pneg %p51
      %p262 = pneg %p48
      %p263 = scmp.lt.s32.totalorder %s20, 1
      %s264 = scalar_select %p263, %s20, 1
      %s265 = smul.addr %s264, 2
      %s266 = smul.addr %s265, 8
      %s267 = scalar_lea.vmem %s1, %s266
      %p268 = pneg %p77
      %p269 = pneg %p74
      %p270 = scmp.lt.s32.totalorder %s20, 1
      %s271 = scalar_select %p270, %s20, 1
      %s272 = smul.addr %s271, 4
      %s273 = smul.addr %s272, 8
      %s274 = scalar_lea.vmem %s2, %s273
      %p275 = pneg %p103
      %p276 = pneg %p100
      %p277 = scmp.lt.s32.totalorder %s20, 1
      %s278 = scalar_select %p277, %s20, 1
      %s279 = scalar_lea.vmem %s3, %s278
      %p280 = pneg %p129
      %p281 = pneg %p126
      %p282 = scmp.lt.s32.totalorder %s20, 1
      %s283 = scalar_select %p282, %s20, 1
      %s284 = smul.addr %s283, 4
      %s285 = smul.addr %s284, 8
      %s286 = scalar_lea.vmem %s4, %s285
      %p287 = pneg %p155
      %p288 = pneg %p152
      %p289 = pneg %p183
      %p290 = pneg %p180
      %s291 = smul.u32 8, %s21
      %p292 = scmp.lt.s32.totalorder %s20, 1
      %s293 = scalar_select %p292, %s20, 1
      %p294 = scmp.lt.s32.totalorder %s291, 7
      %s295 = scalar_select %p294, %s291, 7
      %s296 = smul.addr %s293, 8
      %s297 = sadd.s32 %s295, %s296
      %s298 = smul.addr %s297, 8
      %s299 = scalar_lea.vmem %s5, %s298
      %s300 = smul.u32 8, %s21
      %p301 = scmp.lt.s32.totalorder %s20, 1
      %s302 = scalar_select %p301, %s20, 1
      %p303 = scmp.lt.s32.totalorder %s300, 7
      %s304 = scalar_select %p303, %s300, 7
      %s305 = smul.addr %s302, 8
      %s306 = sadd.s32 %s304, %s305
      %s307 = smul.addr %s306, 8
      %s308 = scalar_lea.vmem %s0, %s307
      %s309 = smul.u32 8, %s21
      %p310 = scmp.lt.s32.totalorder %s20, 1
      %s311 = scalar_select %p310, %s20, 1
      %s312 = smul.addr %s311, 2
      %s313 = smul.addr %s312, 8
      %s314 = scalar_lea.vmem %s1, %s313
      %p315 = scmp.lt.s32.totalorder %s20, 1
      %s316 = scalar_select %p315, %s20, 1
      %s317 = smul.addr %s316, 4
      %s318 = smul.addr %s317, 8
      %s319 = scalar_lea.vmem %s2, %s318
      %p320 = scmp.lt.s32.totalorder %s20, 1
      %s321 = scalar_select %p320, %s20, 1
      %s322 = scalar_lea.vmem %s3, %s321
      %p323 = scmp.lt.s32.totalorder %s20, 1
      %s324 = scalar_select %p323, %s20, 1
      %s325 = smul.addr %s324, 4
      %s326 = smul.addr %s325, 8
      %s327 = scalar_lea.vmem %s4, %s326
      %s328 = smul.u32 8, %s21
      %p329 = scmp.lt.s32.totalorder %s20, 1
      %s330 = scalar_select %p329, %s20, 1
      %p331 = scmp.lt.s32.totalorder %s328, 7
      %s332 = scalar_select %p331, %s328, 7
      %s333 = smul.addr %s330, 8
      %s334 = sadd.s32 %s332, %s333
      %s335 = smul.addr %s334, 8
      %s336 = scalar_lea.vmem %s5, %s335
      %s337 = smul.u32 8, %s21
      %p338 = scmp.eq.s32.totalorder %s21, 0
      // Predicated region
      $region41: #{_lstm2_forward.1} parent=39 // pred_check
        %p339 = pneg %p338
      $region42: #{_lstm2_forward.1} parent=39 // pred_check_branch
        %341 = sbr.rel (%p339) target = $region44
      $region43: #{_lstm2_forward.1} parent=39 // pred_region
        %vm342 = vcmask 261120
        %343 = vst.msk [vmem:[#allocation4] sm:$0xff] %vm342, 0.0
        %344 = vst.msk [vmem:[#allocation5] sm:$0xff] %vm342, 0.0
      $region44: #{_lstm2_forward.1} parent=39 // pred_fallthru
        _
      %v345 = vld [vmem:[%s308] sm:$0xff]
      %v346 = vld [vmem:[%s308 + $0x8] sm:$0xff]
      %v347 = vld [vmem:[%s308 + $0x10] sm:$0xff]
      %v348 = vld [vmem:[%s308 + $0x18] sm:$0xff]
      %v349 = vld [vmem:[%s308 + $0x20] sm:$0xff]
      %v350 = vld [vmem:[%s308 + $0x28] sm:$0xff]
      %v351 = vld [vmem:[%s308 + $0x30] sm:$0xff]
      %v352 = vld [vmem:[%s308 + $0x38] sm:$0xff]
      %v353 = vld [vmem:[%s314] sm:$0xff]
      %v354 = vld [vmem:[%s314 + $0x8] sm:$0xff]
      %v355 = vld [vmem:[%s322] sm:$0x1]
      %v357 = vlaneseq
      %v358 = vshrl.u32 %v357, 7
      %v359 = vsub.s32 0, %v358
      %v360 = vrot.slane %v355, %v359
      %vm362 = vcmask 130048
      %v364 = vsel %vm362, %v345, 0
      %v367 = vsel %vm362, %v346, 0
      %v370 = vsel %vm362, %v347, 0
      %v373 = vsel %vm362, %v348, 0
      %v376 = vsel %vm362, %v349, 0
      %v379 = vsel %vm362, %v350, 0
      %v382 = vsel %vm362, %v351, 0
      %v385 = vsel %vm362, %v352, 0
      %387 = vmatprep.subr.mxu0 0.0
      %388 = vmatpush1.msra.mxu0 %v353
      %389 = vmatprep.subr.mxu0 0.0
      %390 = vmatpush1.msra.mxu0 %v354
      %391 = vmatprep.subr.mxu0 0.0
      %392 = vmatpush1.msra.mxu0 0.0
      %393 = vmatprep.subr.mxu0 0.0
      %394 = vmatpush1.msra.mxu0 0.0
      %395 = vmatprep.subr.mxu0 0.0
      %396 = vmatpush1.msra.mxu0 0.0
      %397 = vmatprep.subr.mxu0 0.0
      %398 = vmatpush1.msra.mxu0 0.0
      %399 = vmatprep.subr.mxu0 0.0
      %400 = vmatpush1.msra.mxu0 0.0
      %401 = vmatprep.subr.mxu0 0.0
      %402 = vmatpush1.msra.mxu0 0.0
      %403 = vmatprep.subr.mxu0 0.0
      %404 = vmatpush1.msra.mxu0 0.0
      %405 = vmatprep.subr.mxu0 0.0
      %406 = vmatpush1.msra.mxu0 0.0
      %407 = vmatprep.subr.mxu0 0.0
      %408 = vmatpush1.msra.mxu0 0.0
      %409 = vmatprep.subr.mxu0 0.0
      %410 = vmatpush1.msra.mxu0 0.0
      %411 = vmatprep.subr.mxu0 0.0
      %412 = vmatpush1.msra.mxu0 0.0
      %413 = vmatprep.subr.mxu0 0.0
      %414 = vmatpush1.msra.mxu0 0.0
      %415 = vmatprep.subr.mxu0 0.0
      %416 = vmatpush1.msra.mxu0 0.0
      %417 = vmatprep.subr.mxu0 0.0
      %418 = vmatpush1.msra.mxu0 0.0
      %419 = vmatprep.subr.mxu0 0.0
      %420 = vmatpush1.msra.mxu0 0.0
      %421 = vmatprep.subr.mxu0 0.0
      %422 = vmatpush1.msra.mxu0 0.0
      %423 = vmatprep.subr.mxu0 0.0
      %424 = vmatpush1.msra.mxu0 0.0
      %425 = vmatprep.subr.mxu0 0.0
      %426 = vmatpush1.msra.mxu0 0.0
      %427 = vmatprep.subr.mxu0 0.0
      %428 = vmatpush1.msra.mxu0 0.0
      %429 = vmatprep.subr.mxu0 0.0
      %430 = vmatpush1.msra.mxu0 0.0
      %431 = vmatprep.subr.mxu0 0.0
      %432 = vmatpush1.msra.mxu0 0.0
      %433 = vmatprep.subr.mxu0 0.0
      %434 = vmatpush1.msra.mxu0 0.0
      %435 = vmatprep.subr.mxu0 0.0
      %436 = vmatpush1.msra.mxu0 0.0
      %437 = vmatprep.subr.mxu0 0.0
      %438 = vmatpush1.msra.mxu0 0.0
      %439 = vmatprep.subr.mxu0 0.0
      %440 = vmatpush1.msra.mxu0 0.0
      %441 = vmatprep.subr.mxu0 0.0
      %442 = vmatpush1.msra.mxu0 0.0
      %443 = vmatprep.subr.mxu0 0.0
      %444 = vmatpush1.msra.mxu0 0.0
      %445 = vmatprep.subr.mxu0 0.0
      %446 = vmatpush1.msra.mxu0 0.0
      %447 = vmatprep.subr.mxu0 0.0
      %448 = vmatpush1.msra.mxu0 0.0
      %449 = vmatprep.subr.mxu0 0.0
      %450 = vmatpush1.msra.mxu0 0.0
      %451 = vmatprep.mubr.f32.mxu0 0.0
      %452 = vmatmul.mubr.f32.gmra.mrb[0].mxu0 %v364
      %v453 = vpop.f32.mrb[0].mxu0
      %v454 = vadd.f32 %v360, %v453
      %v455 = vpop.f32.mrb[0].mxu0
      %456 = vmatprep.mubr.f32.mxu0 0.0
      %457 = vmatmul.mubr.f32.gmra.mrb[0].mxu0 %v367
      %v458 = vpop.f32.mrb[0].mxu0
      %v459 = vadd.f32 %v360, %v458
      %v460 = vpop.f32.mrb[0].mxu0
      %461 = vmatprep.mubr.f32.mxu0 0.0
      %462 = vmatmul.mubr.f32.gmra.mrb[0].mxu0 %v370
      %v463 = vpop.f32.mrb[0].mxu0
      %v464 = vadd.f32 %v360, %v463
      %v465 = vpop.f32.mrb[0].mxu0
      %466 = vmatprep.mubr.f32.mxu0 0.0
      %467 = vmatmul.mubr.f32.gmra.mrb[0].mxu0 %v373
      %v468 = vpop.f32.mrb[0].mxu0
      %v469 = vadd.f32 %v360, %v468
      %v470 = vpop.f32.mrb[0].mxu0
      %471 = vmatprep.mubr.f32.mxu0 0.0
      %472 = vmatmul.mubr.f32.gmra.mrb[0].mxu0 %v376
      %v473 = vpop.f32.mrb[0].mxu0
      %v474 = vadd.f32 %v360, %v473
      %v475 = vpop.f32.mrb[0].mxu0
      %476 = vmatprep.mubr.f32.mxu0 0.0
      %477 = vmatmul.mubr.f32.gmra.mrb[0].mxu0 %v379
      %v478 = vpop.f32.mrb[0].mxu0
      %v479 = vadd.f32 %v360, %v478
      %v480 = vpop.f32.mrb[0].mxu0
      %481 = vmatprep.mubr.f32.mxu0 0.0
      %482 = vmatmul.mubr.f32.gmra.mrb[0].mxu0 %v382
      %v483 = vpop.f32.mrb[0].mxu0
      %v484 = vadd.f32 %v360, %v483
      %v485 = vpop.f32.mrb[0].mxu0
      %486 = vmatprep.mubr.f32.mxu0 0.0
      %487 = vmatmul.mubr.f32.gmra.mrb[0].mxu0 %v385
      %v488 = vpop.f32.mrb[0].mxu0
      %v489 = vadd.f32 %v360, %v488
      %v490 = vpop.f32.mrb[0].mxu0
      %491 = vdwg.mxu0
      %492 = vst [vmem:[#allocation2] sm:$0xff] %v454
      %493 = vst [vmem:[#allocation2 + $0x8] sm:$0xff] %v459
      %494 = vst [vmem:[#allocation2 + $0x10] sm:$0xff] %v464
      %495 = vst [vmem:[#allocation2 + $0x18] sm:$0xff] %v469
      %496 = vst [vmem:[#allocation2 + $0x20] sm:$0xff] %v474
      %497 = vst [vmem:[#allocation2 + $0x28] sm:$0xff] %v479
      %498 = vst [vmem:[#allocation2 + $0x30] sm:$0xff] %v484
      %499 = vst [vmem:[#allocation2 + $0x38] sm:$0xff] %v489
      %v500 = vld [vmem:[%s319] sm:$0xff]
      %v501 = vld [vmem:[%s319 + $0x8] sm:$0xff]
      %v502 = vld [vmem:[%s319 + $0x10] sm:$0xff]
      %v503 = vld [vmem:[%s319 + $0x18] sm:$0xff]
      %v504 = vld [vmem:[#allocation4] sm:$0xff]
      %v505 = vld [vmem:[#allocation5] sm:$0xff]
      %v506 = vld [vmem:[#allocation2] sm:$0xff]
      %vm507 = vcmask 261120
      %v509 = vsel %vm507, %v504, 0
      %511 = vmatprep.subr.mxu0 0.0
      %512 = vmatpush1.msra.mxu0 %v500
      %513 = vmatprep.subr.mxu0 0.0
      %514 = vmatpush1.msra.mxu0 %v501
      %515 = vmatprep.subr.mxu0 0.0
      %516 = vmatpush1.msra.mxu0 %v502
      %517 = vmatprep.subr.mxu0 0.0
      %518 = vmatpush1.msra.mxu0 %v503
      %519 = vmatprep.subr.mxu0 0.0
      %520 = vmatpush1.msra.mxu0 0.0
      %521 = vmatprep.subr.mxu0 0.0
      %522 = vmatpush1.msra.mxu0 0.0
      %523 = vmatprep.subr.mxu0 0.0
      %524 = vmatpush1.msra.mxu0 0.0
      %525 = vmatprep.subr.mxu0 0.0
      %526 = vmatpush1.msra.mxu0 0.0
      %527 = vmatprep.subr.mxu0 0.0
      %528 = vmatpush1.msra.mxu0 0.0
      %529 = vmatprep.subr.mxu0 0.0
      %530 = vmatpush1.msra.mxu0 0.0
      %531 = vmatprep.subr.mxu0 0.0
      %532 = vmatpush1.msra.mxu0 0.0
      %533 = vmatprep.subr.mxu0 0.0
      %534 = vmatpush1.msra.mxu0 0.0
      %535 = vmatprep.subr.mxu0 0.0
      %536 = vmatpush1.msra.mxu0 0.0
      %537 = vmatprep.subr.mxu0 0.0
      %538 = vmatpush1.msra.mxu0 0.0
      %539 = vmatprep.subr.mxu0 0.0
      %540 = vmatpush1.msra.mxu0 0.0
      %541 = vmatprep.subr.mxu0 0.0
      %542 = vmatpush1.msra.mxu0 0.0
      %543 = vmatprep.subr.mxu0 0.0
      %544 = vmatpush1.msra.mxu0 0.0
      %545 = vmatprep.subr.mxu0 0.0
      %546 = vmatpush1.msra.mxu0 0.0
      %547 = vmatprep.subr.mxu0 0.0
      %548 = vmatpush1.msra.mxu0 0.0
      %549 = vmatprep.subr.mxu0 0.0
      %550 = vmatpush1.msra.mxu0 0.0
      %551 = vmatprep.subr.mxu0 0.0
      %552 = vmatpush1.msra.mxu0 0.0
      %553 = vmatprep.subr.mxu0 0.0
      %554 = vmatpush1.msra.mxu0 0.0
      %555 = vmatprep.subr.mxu0 0.0
      %556 = vmatpush1.msra.mxu0 0.0
      %557 = vmatprep.subr.mxu0 0.0
      %558 = vmatpush1.msra.mxu0 0.0
      %559 = vmatprep.subr.mxu0 0.0
      %560 = vmatpush1.msra.mxu0 0.0
      %561 = vmatprep.subr.mxu0 0.0
      %562 = vmatpush1.msra.mxu0 0.0
      %563 = vmatprep.subr.mxu0 0.0
      %564 = vmatpush1.msra.mxu0 0.0
      %565 = vmatprep.subr.mxu0 0.0
      %566 = vmatpush1.msra.mxu0 0.0
      %567 = vmatprep.subr.mxu0 0.0
      %568 = vmatpush1.msra.mxu0 0.0
      %569 = vmatprep.subr.mxu0 0.0
      %570 = vmatpush1.msra.mxu0 0.0
      %571 = vmatprep.subr.mxu0 0.0
      %572 = vmatpush1.msra.mxu0 0.0
      %573 = vmatprep.subr.mxu0 0.0
      %574 = vmatpush1.msra.mxu0 0.0
      %575 = vmatprep.mubr.f32.mxu0 0.0
      %576 = vmatmul.mubr.f32.gmra.mrb[0].mxu0 %v509
      %v577 = vpop.f32.mrb[0].mxu0
      %v578 = vadd.f32 0.0, %v577
      %v579 = vpop.f32.mrb[0].mxu0
      %580 = vdwg.mxu0
      %v581 = vadd.f32 %v506, %v578
      %v582 = vtanh.pop %v581
      %v583 = vmul.f32 %v582, 0.5
      %v584 = vadd.f32 %v583, 0.5
      %586 = vrot.lane.b32.xlu0 %v505, 32
      %v587 = vpop.permute.xlu0 %586
      %v589 = vmul.f32 %v584, %v587
      %591 = vrot.lane.b32.xlu0 %v582, 32
      %v592 = vpop.permute.xlu0 %591
      %v594 = vmul.f32 %v584, %v592
      %596 = vrot.lane.b32.xlu0 %v594, 32
      %v597 = vpop.permute.xlu0 %596
      %v599 = vadd.f32 %v589, %v597
      %v600 = vtanh.pop %v599
      %602 = vrot.lane.b32.xlu0 %v600, 32
      %v603 = vpop.permute.xlu0 %602
      %v605 = vmul.f32 %v584, %v603
      %607 = vrot.lane.b32.xlu0 %v605, 64
      %v608 = vpop.permute.xlu0 %607
      %610 = vst.msk [vmem:[#allocation3] sm:$0xff] %vm507, %v608
      %s611 = scalar_lea.vmem [#allocation2], 8
      %v612 = vld [vmem:[%s611] sm:$0xff]
      %v613 = vsel %vm507, %v608, 0
      %615 = vmatprep.subr.mxu0 0.0
      %616 = vmatpush1.msra.mxu0 %v500
      %617 = vmatprep.subr.mxu0 0.0
      %618 = vmatpush1.msra.mxu0 %v501
      %619 = vmatprep.subr.mxu0 0.0
      %620 = vmatpush1.msra.mxu0 %v502
      %621 = vmatprep.subr.mxu0 0.0
      %622 = vmatpush1.msra.mxu0 %v503
      %623 = vmatprep.subr.mxu0 0.0
      %624 = vmatpush1.msra.mxu0 0.0
      %625 = vmatprep.subr.mxu0 0.0
      %626 = vmatpush1.msra.mxu0 0.0
      %627 = vmatprep.subr.mxu0 0.0
      %628 = vmatpush1.msra.mxu0 0.0
      %629 = vmatprep.subr.mxu0 0.0
      %630 = vmatpush1.msra.mxu0 0.0
      %631 = vmatprep.subr.mxu0 0.0
      %632 = vmatpush1.msra.mxu0 0.0
      %633 = vmatprep.subr.mxu0 0.0
      %634 = vmatpush1.msra.mxu0 0.0
      %635 = vmatprep.subr.mxu0 0.0
      %636 = vmatpush1.msra.mxu0 0.0
      %637 = vmatprep.subr.mxu0 0.0
      %638 = vmatpush1.msra.mxu0 0.0
      %639 = vmatprep.subr.mxu0 0.0
      %640 = vmatpush1.msra.mxu0 0.0
      %641 = vmatprep.subr.mxu0 0.0
      %642 = vmatpush1.msra.mxu0 0.0
      %643 = vmatprep.subr.mxu0 0.0
      %644 = vmatpush1.msra.mxu0 0.0
      %645 = vmatprep.subr.mxu0 0.0
      %646 = vmatpush1.msra.mxu0 0.0
      %647 = vmatprep.subr.mxu0 0.0
      %648 = vmatpush1.msra.mxu0 0.0
      %649 = vmatprep.subr.mxu0 0.0
      %650 = vmatpush1.msra.mxu0 0.0
      %651 = vmatprep.subr.mxu0 0.0
      %652 = vmatpush1.msra.mxu0 0.0
      %653 = vmatprep.subr.mxu0 0.0
      %654 = vmatpush1.msra.mxu0 0.0
      %655 = vmatprep.subr.mxu0 0.0
      %656 = vmatpush1.msra.mxu0 0.0
      %657 = vmatprep.subr.mxu0 0.0
      %658 = vmatpush1.msra.mxu0 0.0
      %659 = vmatprep.subr.mxu0 0.0
      %660 = vmatpush1.msra.mxu0 0.0
      %661 = vmatprep.subr.mxu0 0.0
      %662 = vmatpush1.msra.mxu0 0.0
      %663 = vmatprep.subr.mxu0 0.0
      %664 = vmatpush1.msra.mxu0 0.0
      %665 = vmatprep.subr.mxu0 0.0
      %666 = vmatpush1.msra.mxu0 0.0
      %667 = vmatprep.subr.mxu0 0.0
      %668 = vmatpush1.msra.mxu0 0.0
      %669 = vmatprep.subr.mxu0 0.0
      %670 = vmatpush1.msra.mxu0 0.0
      %671 = vmatprep.subr.mxu0 0.0
      %672 = vmatpush1.msra.mxu0 0.0
      %673 = vmatprep.subr.mxu0 0.0
      %674 = vmatpush1.msra.mxu0 0.0
      %675 = vmatprep.subr.mxu0 0.0
      %676 = vmatpush1.msra.mxu0 0.0
      %677 = vmatprep.subr.mxu0 0.0
      %678 = vmatpush1.msra.mxu0 0.0
      %679 = vmatprep.mubr.f32.mxu0 0.0
      %680 = vmatmul.mubr.f32.gmra.mrb[0].mxu0 %v613
      %v681 = vpop.f32.mrb[0].mxu0
      %v682 = vadd.f32 0.0, %v681
      %v683 = vpop.f32.mrb[0].mxu0
      %684 = vdwg.mxu0
      %v685 = vadd.f32 %v612, %v682
      %v686 = vtanh.pop %v685
      %v687 = vmul.f32 %v686, 0.5
      %v688 = vadd.f32 %v687, 0.5
      %v689 = vmul.f32 %v688, %v599
      %691 = vrot.lane.b32.xlu0 %v686, 32
      %v692 = vpop.permute.xlu0 %691
      %v694 = vmul.f32 %v688, %v692
      %696 = vrot.lane.b32.xlu0 %v694, 32
      %v697 = vpop.permute.xlu0 %696
      %v699 = vadd.f32 %v689, %v697
      %v700 = vtanh.pop %v699
      %702 = vrot.lane.b32.xlu0 %v700, 32
      %v703 = vpop.permute.xlu0 %702
      %v705 = vmul.f32 %v688, %v703
      %707 = vrot.lane.b32.xlu0 %v705, 64
      %v708 = vpop.permute.xlu0 %707
      %s710 = scalar_lea.vmem [#allocation3], 8
      %711 = vst.msk [vmem:[%s710] sm:$0xff] %vm507, %v708
      %s712 = scalar_lea.vmem [#allocation2], 16
      %v713 = vld [vmem:[%s712] sm:$0xff]
      %v714 = vsel %vm507, %v708, 0
      %716 = vmatprep.subr.mxu0 0.0
      %717 = vmatpush1.msra.mxu0 %v500
      %718 = vmatprep.subr.mxu0 0.0
      %719 = vmatpush1.msra.mxu0 %v501
      %720 = vmatprep.subr.mxu0 0.0
      %721 = vmatpush1.msra.mxu0 %v502
      %722 = vmatprep.subr.mxu0 0.0
      %723 = vmatpush1.msra.mxu0 %v503
      %724 = vmatprep.subr.mxu0 0.0
      %725 = vmatpush1.msra.mxu0 0.0
      %726 = vmatprep.subr.mxu0 0.0
      %727 = vmatpush1.msra.mxu0 0.0
      %728 = vmatprep.subr.mxu0 0.0
      %729 = vmatpush1.msra.mxu0 0.0
      %730 = vmatprep.subr.mxu0 0.0
      %731 = vmatpush1.msra.mxu0 0.0
      %732 = vmatprep.subr.mxu0 0.0
      %733 = vmatpush1.msra.mxu0 0.0
      %734 = vmatprep.subr.mxu0 0.0
      %735 = vmatpush1.msra.mxu0 0.0
      %736 = vmatprep.subr.mxu0 0.0
      %737 = vmatpush1.msra.mxu0 0.0
      %738 = vmatprep.subr.mxu0 0.0
      %739 = vmatpush1.msra.mxu0 0.0
      %740 = vmatprep.subr.mxu0 0.0
      %741 = vmatpush1.msra.mxu0 0.0
      %742 = vmatprep.subr.mxu0 0.0
      %743 = vmatpush1.msra.mxu0 0.0
      %744 = vmatprep.subr.mxu0 0.0
      %745 = vmatpush1.msra.mxu0 0.0
      %746 = vmatprep.subr.mxu0 0.0
      %747 = vmatpush1.msra.mxu0 0.0
      %748 = vmatprep.subr.mxu0 0.0
      %749 = vmatpush1.msra.mxu0 0.0
      %750 = vmatprep.subr.mxu0 0.0
      %751 = vmatpush1.msra.mxu0 0.0
      %752 = vmatprep.subr.mxu0 0.0
      %753 = vmatpush1.msra.mxu0 0.0
      %754 = vmatprep.subr.mxu0 0.0
      %755 = vmatpush1.msra.mxu0 0.0
      %756 = vmatprep.subr.mxu0 0.0
      %757 = vmatpush1.msra.mxu0 0.0
      %758 = vmatprep.subr.mxu0 0.0
      %759 = vmatpush1.msra.mxu0 0.0
      %760 = vmatprep.subr.mxu0 0.0
      %761 = vmatpush1.msra.mxu0 0.0
      %762 = vmatprep.subr.mxu0 0.0
      %763 = vmatpush1.msra.mxu0 0.0
      %764 = vmatprep.subr.mxu0 0.0
      %765 = vmatpush1.msra.mxu0 0.0
      %766 = vmatprep.subr.mxu0 0.0
      %767 = vmatpush1.msra.mxu0 0.0
      %768 = vmatprep.subr.mxu0 0.0
      %769 = vmatpush1.msra.mxu0 0.0
      %770 = vmatprep.subr.mxu0 0.0
      %771 = vmatpush1.msra.mxu0 0.0
      %772 = vmatprep.subr.mxu0 0.0
      %773 = vmatpush1.msra.mxu0 0.0
      %774 = vmatprep.subr.mxu0 0.0
      %775 = vmatpush1.msra.mxu0 0.0
      %776 = vmatprep.subr.mxu0 0.0
      %777 = vmatpush1.msra.mxu0 0.0
      %778 = vmatprep.subr.mxu0 0.0
      %779 = vmatpush1.msra.mxu0 0.0
      %780 = vmatprep.mubr.f32.mxu0 0.0
      %781 = vmatmul.mubr.f32.gmra.mrb[0].mxu0 %v714
      %v782 = vpop.f32.mrb[0].mxu0
      %v783 = vadd.f32 0.0, %v782
      %v784 = vpop.f32.mrb[0].mxu0
      %785 = vdwg.mxu0
      %v786 = vadd.f32 %v713, %v783
      %v787 = vtanh.pop %v786
      %v788 = vmul.f32 %v787, 0.5
      %v789 = vadd.f32 %v788, 0.5
      %v790 = vmul.f32 %v789, %v699
      %792 = vrot.lane.b32.xlu0 %v787, 32
      %v793 = vpop.permute.xlu0 %792
      %v795 = vmul.f32 %v789, %v793
      %797 = vrot.lane.b32.xlu0 %v795, 32
      %v798 = vpop.permute.xlu0 %797
      %v800 = vadd.f32 %v790, %v798
      %v801 = vtanh.pop %v800
      %803 = vrot.lane.b32.xlu0 %v801, 32
      %v804 = vpop.permute.xlu0 %803
      %v806 = vmul.f32 %v789, %v804
      %808 = vrot.lane.b32.xlu0 %v806, 64
      %v809 = vpop.permute.xlu0 %808
      %s811 = scalar_lea.vmem [#allocation3], 16
      %812 = vst.msk [vmem:[%s811] sm:$0xff] %vm507, %v809
      %s813 = scalar_lea.vmem [#allocation2], 24
      %v814 = vld [vmem:[%s813] sm:$0xff]
      %v815 = vsel %vm507, %v809, 0
      %817 = vmatprep.subr.mxu0 0.0
      %818 = vmatpush1.msra.mxu0 %v500
      %819 = vmatprep.subr.mxu0 0.0
      %820 = vmatpush1.msra.mxu0 %v501
      %821 = vmatprep.subr.mxu0 0.0
      %822 = vmatpush1.msra.mxu0 %v502
      %823 = vmatprep.subr.mxu0 0.0
      %824 = vmatpush1.msra.mxu0 %v503
      %825 = vmatprep.subr.mxu0 0.0
      %826 = vmatpush1.msra.mxu0 0.0
      %827 = vmatprep.subr.mxu0 0.0
      %828 = vmatpush1.msra.mxu0 0.0
      %829 = vmatprep.subr.mxu0 0.0
      %830 = vmatpush1.msra.mxu0 0.0
      %831 = vmatprep.subr.mxu0 0.0
      %832 = vmatpush1.msra.mxu0 0.0
      %833 = vmatprep.subr.mxu0 0.0
      %834 = vmatpush1.msra.mxu0 0.0
      %835 = vmatprep.subr.mxu0 0.0
      %836 = vmatpush1.msra.mxu0 0.0
      %837 = vmatprep.subr.mxu0 0.0
      %838 = vmatpush1.msra.mxu0 0.0
      %839 = vmatprep.subr.mxu0 0.0
      %840 = vmatpush1.msra.mxu0 0.0
      %841 = vmatprep.subr.mxu0 0.0
      %842 = vmatpush1.msra.mxu0 0.0
      %843 = vmatprep.subr.mxu0 0.0
      %844 = vmatpush1.msra.mxu0 0.0
      %845 = vmatprep.subr.mxu0 0.0
      %846 = vmatpush1.msra.mxu0 0.0
      %847 = vmatprep.subr.mxu0 0.0
      %848 = vmatpush1.msra.mxu0 0.0
      %849 = vmatprep.subr.mxu0 0.0
      %850 = vmatpush1.msra.mxu0 0.0
      %851 = vmatprep.subr.mxu0 0.0
      %852 = vmatpush1.msra.mxu0 0.0
      %853 = vmatprep.subr.mxu0 0.0
      %854 = vmatpush1.msra.mxu0 0.0
      %855 = vmatprep.subr.mxu0 0.0
      %856 = vmatpush1.msra.mxu0 0.0
      %857 = vmatprep.subr.mxu0 0.0
      %858 = vmatpush1.msra.mxu0 0.0
      %859 = vmatprep.subr.mxu0 0.0
      %860 = vmatpush1.msra.mxu0 0.0
      %861 = vmatprep.subr.mxu0 0.0
      %862 = vmatpush1.msra.mxu0 0.0
      %863 = vmatprep.subr.mxu0 0.0
      %864 = vmatpush1.msra.mxu0 0.0
      %865 = vmatprep.subr.mxu0 0.0
      %866 = vmatpush1.msra.mxu0 0.0
      %867 = vmatprep.subr.mxu0 0.0
      %868 = vmatpush1.msra.mxu0 0.0
      %869 = vmatprep.subr.mxu0 0.0
      %870 = vmatpush1.msra.mxu0 0.0
      %871 = vmatprep.subr.mxu0 0.0
      %872 = vmatpush1.msra.mxu0 0.0
      %873 = vmatprep.subr.mxu0 0.0
      %874 = vmatpush1.msra.mxu0 0.0
      %875 = vmatprep.subr.mxu0 0.0
      %876 = vmatpush1.msra.mxu0 0.0
      %877 = vmatprep.subr.mxu0 0.0
      %878 = vmatpush1.msra.mxu0 0.0
      %879 = vmatprep.subr.mxu0 0.0
      %880 = vmatpush1.msra.mxu0 0.0
      %881 = vmatprep.mubr.f32.mxu0 0.0
      %882 = vmatmul.mubr.f32.gmra.mrb[0].mxu0 %v815
      %v883 = vpop.f32.mrb[0].mxu0
      %v884 = vadd.f32 0.0, %v883
      %v885 = vpop.f32.mrb[0].mxu0
      %886 = vdwg.mxu0
      %v887 = vadd.f32 %v814, %v884
      %v888 = vtanh.pop %v887
      %v889 = vmul.f32 %v888, 0.5
      %v890 = vadd.f32 %v889, 0.5
      %v891 = vmul.f32 %v890, %v800
      %893 = vrot.lane.b32.xlu0 %v888, 32
      %v894 = vpop.permute.xlu0 %893
      %v896 = vmul.f32 %v890, %v894
      %898 = vrot.lane.b32.xlu0 %v896, 32
      %v899 = vpop.permute.xlu0 %898
      %v901 = vadd.f32 %v891, %v899
      %v902 = vtanh.pop %v901
      %904 = vrot.lane.b32.xlu0 %v902, 32
      %v905 = vpop.permute.xlu0 %904
      %v907 = vmul.f32 %v890, %v905
      %909 = vrot.lane.b32.xlu0 %v907, 64
      %v910 = vpop.permute.xlu0 %909
      %s912 = scalar_lea.vmem [#allocation3], 24
      %913 = vst.msk [vmem:[%s912] sm:$0xff] %vm507, %v910
      %s914 = scalar_lea.vmem [#allocation2], 32
      %v915 = vld [vmem:[%s914] sm:$0xff]
      %v916 = vsel %vm507, %v910, 0
      %918 = vmatprep.subr.mxu0 0.0
      %919 = vmatpush1.msra.mxu0 %v500
      %920 = vmatprep.subr.mxu0 0.0
      %921 = vmatpush1.msra.mxu0 %v501
      %922 = vmatprep.subr.mxu0 0.0
      %923 = vmatpush1.msra.mxu0 %v502
      %924 = vmatprep.subr.mxu0 0.0
      %925 = vmatpush1.msra.mxu0 %v503
      %926 = vmatprep.subr.mxu0 0.0
      %927 = vmatpush1.msra.mxu0 0.0
      %928 = vmatprep.subr.mxu0 0.0
      %929 = vmatpush1.msra.mxu0 0.0
      %930 = vmatprep.subr.mxu0 0.0
      %931 = vmatpush1.msra.mxu0 0.0
      %932 = vmatprep.subr.mxu0 0.0
      %933 = vmatpush1.msra.mxu0 0.0
      %934 = vmatprep.subr.mxu0 0.0
      %935 = vmatpush1.msra.mxu0 0.0
      %936 = vmatprep.subr.mxu0 0.0
      %937 = vmatpush1.msra.mxu0 0.0
      %938 = vmatprep.subr.mxu0 0.0
      %939 = vmatpush1.msra.mxu0 0.0
      %940 = vmatprep.subr.mxu0 0.0
      %941 = vmatpush1.msra.mxu0 0.0
      %942 = vmatprep.subr.mxu0 0.0
      %943 = vmatpush1.msra.mxu0 0.0
      %944 = vmatprep.subr.mxu0 0.0
      %945 = vmatpush1.msra.mxu0 0.0
      %946 = vmatprep.subr.mxu0 0.0
      %947 = vmatpush1.msra.mxu0 0.0
      %948 = vmatprep.subr.mxu0 0.0
      %949 = vmatpush1.msra.mxu0 0.0
      %950 = vmatprep.subr.mxu0 0.0
      %951 = vmatpush1.msra.mxu0 0.0
      %952 = vmatprep.subr.mxu0 0.0
      %953 = vmatpush1.msra.mxu0 0.0
      %954 = vmatprep.subr.mxu0 0.0
      %955 = vmatpush1.msra.mxu0 0.0
      %956 = vmatprep.subr.mxu0 0.0
      %957 = vmatpush1.msra.mxu0 0.0
      %958 = vmatprep.subr.mxu0 0.0
      %959 = vmatpush1.msra.mxu0 0.0
      %960 = vmatprep.subr.mxu0 0.0
      %961 = vmatpush1.msra.mxu0 0.0
      %962 = vmatprep.subr.mxu0 0.0
      %963 = vmatpush1.msra.mxu0 0.0
      %964 = vmatprep.subr.mxu0 0.0
      %965 = vmatpush1.msra.mxu0 0.0
      %966 = vmatprep.subr.mxu0 0.0
      %967 = vmatpush1.msra.mxu0 0.0
      %968 = vmatprep.subr.mxu0 0.0
      %969 = vmatpush1.msra.mxu0 0.0
      %970 = vmatprep.subr.mxu0 0.0
      %971 = vmatpush1.msra.mxu0 0.0
      %972 = vmatprep.subr.mxu0 0.0
      %973 = vmatpush1.msra.mxu0 0.0
      %974 = vmatprep.subr.mxu0 0.0
      %975 = vmatpush1.msra.mxu0 0.0
      %976 = vmatprep.subr.mxu0 0.0
      %977 = vmatpush1.msra.mxu0 0.0
      %978 = vmatprep.subr.mxu0 0.0
      %979 = vmatpush1.msra.mxu0 0.0
      %980 = vmatprep.subr.mxu0 0.0
      %981 = vmatpush1.msra.mxu0 0.0
      %982 = vmatprep.mubr.f32.mxu0 0.0
      %983 = vmatmul.mubr.f32.gmra.mrb[0].mxu0 %v916
      %v984 = vpop.f32.mrb[0].mxu0
      %v985 = vadd.f32 0.0, %v984
      %v986 = vpop.f32.mrb[0].mxu0
      %987 = vdwg.mxu0
      %v988 = vadd.f32 %v915, %v985
      %v989 = vtanh.pop %v988
      %v990 = vmul.f32 %v989, 0.5
      %v991 = vadd.f32 %v990, 0.5
      %v992 = vmul.f32 %v991, %v901
      %994 = vrot.lane.b32.xlu0 %v989, 32
      %v995 = vpop.permute.xlu0 %994
      %v997 = vmul.f32 %v991, %v995
      %999 = vrot.lane.b32.xlu0 %v997, 32
      %v1000 = vpop.permute.xlu0 %999
      %v1002 = vadd.f32 %v992, %v1000
      %v1003 = vtanh.pop %v1002
      %1005 = vrot.lane.b32.xlu0 %v1003, 32
      %v1006 = vpop.permute.xlu0 %1005
      %v1008 = vmul.f32 %v991, %v1006
      %1010 = vrot.lane.b32.xlu0 %v1008, 64
      %v1011 = vpop.permute.xlu0 %1010
      %s1013 = scalar_lea.vmem [#allocation3], 32
      %1014 = vst.msk [vmem:[%s1013] sm:$0xff] %vm507, %v1011
      %s1015 = scalar_lea.vmem [#allocation2], 40
      %v1016 = vld [vmem:[%s1015] sm:$0xff]
      %v1017 = vsel %vm507, %v1011, 0
      %1019 = vmatprep.subr.mxu0 0.0
      %1020 = vmatpush1.msra.mxu0 %v500
      %1021 = vmatprep.subr.mxu0 0.0
      %1022 = vmatpush1.msra.mxu0 %v501
      %1023 = vmatprep.subr.mxu0 0.0
      %1024 = vmatpush1.msra.mxu0 %v502
      %1025 = vmatprep.subr.mxu0 0.0
      %1026 = vmatpush1.msra.mxu0 %v503
      %1027 = vmatprep.subr.mxu0 0.0
      %1028 = vmatpush1.msra.mxu0 0.0
      %1029 = vmatprep.subr.mxu0 0.0
      %1030 = vmatpush1.msra.mxu0 0.0
      %1031 = vmatprep.subr.mxu0 0.0
      %1032 = vmatpush1.msra.mxu0 0.0
      %1033 = vmatprep.subr.mxu0 0.0
      %1034 = vmatpush1.msra.mxu0 0.0
      %1035 = vmatprep.subr.mxu0 0.0
      %1036 = vmatpush1.msra.mxu0 0.0
      %1037 = vmatprep.subr.mxu0 0.0
      %1038 = vmatpush1.msra.mxu0 0.0
      %1039 = vmatprep.subr.mxu0 0.0
      %1040 = vmatpush1.msra.mxu0 0.0
      %1041 = vmatprep.subr.mxu0 0.0
      %1042 = vmatpush1.msra.mxu0 0.0
      %1043 = vmatprep.subr.mxu0 0.0
      %1044 = vmatpush1.msra.mxu0 0.0
      %1045 = vmatprep.subr.mxu0 0.0
      %1046 = vmatpush1.msra.mxu0 0.0
      %1047 = vmatprep.subr.mxu0 0.0
      %1048 = vmatpush1.msra.mxu0 0.0
      %1049 = vmatprep.subr.mxu0 0.0
      %1050 = vmatpush1.msra.mxu0 0.0
      %1051 = vmatprep.subr.mxu0 0.0
      %1052 = vmatpush1.msra.mxu0 0.0
      %1053 = vmatprep.subr.mxu0 0.0
      %1054 = vmatpush1.msra.mxu0 0.0
      %1055 = vmatprep.subr.mxu0 0.0
      %1056 = vmatpush1.msra.mxu0 0.0
      %1057 = vmatprep.subr.mxu0 0.0
      %1058 = vmatpush1.msra.mxu0 0.0
      %1059 = vmatprep.subr.mxu0 0.0
      %1060 = vmatpush1.msra.mxu0 0.0
      %1061 = vmatprep.subr.mxu0 0.0
      %1062 = vmatpush1.msra.mxu0 0.0
      %1063 = vmatprep.subr.mxu0 0.0
      %1064 = vmatpush1.msra.mxu0 0.0
      %1065 = vmatprep.subr.mxu0 0.0
      %1066 = vmatpush1.msra.mxu0 0.0
      %1067 = vmatprep.subr.mxu0 0.0
      %1068 = vmatpush1.msra.mxu0 0.0
      %1069 = vmatprep.subr.mxu0 0.0
      %1070 = vmatpush1.msra.mxu0 0.0
      %1071 = vmatprep.subr.mxu0 0.0
      %1072 = vmatpush1.msra.mxu0 0.0
      %1073 = vmatprep.subr.mxu0 0.0
      %1074 = vmatpush1.msra.mxu0 0.0
      %1075 = vmatprep.subr.mxu0 0.0
      %1076 = vmatpush1.msra.mxu0 0.0
      %1077 = vmatprep.subr.mxu0 0.0
      %1078 = vmatpush1.msra.mxu0 0.0
      %1079 = vmatprep.subr.mxu0 0.0
      %1080 = vmatpush1.msra.mxu0 0.0
      %1081 = vmatprep.subr.mxu0 0.0
      %1082 = vmatpush1.msra.mxu0 0.0
      %1083 = vmatprep.mubr.f32.mxu0 0.0
      %1084 = vmatmul.mubr.f32.gmra.mrb[0].mxu0 %v1017
      %v1085 = vpop.f32.mrb[0].mxu0
      %v1086 = vadd.f32 0.0, %v1085
      %v1087 = vpop.f32.mrb[0].mxu0
      %1088 = vdwg.mxu0
      %v1089 = vadd.f32 %v1016, %v1086
      %v1090 = vtanh.pop %v1089
      %v1091 = vmul.f32 %v1090, 0.5
      %v1092 = vadd.f32 %v1091, 0.5
      %v1093 = vmul.f32 %v1092, %v1002
      %1095 = vrot.lane.b32.xlu0 %v1090, 32
      %v1096 = vpop.permute.xlu0 %1095
      %v1098 = vmul.f32 %v1092, %v1096
      %1100 = vrot.lane.b32.xlu0 %v1098, 32
      %v1101 = vpop.permute.xlu0 %1100
      %v1103 = vadd.f32 %v1093, %v1101
      %v1104 = vtanh.pop %v1103
      %1106 = vrot.lane.b32.xlu0 %v1104, 32
      %v1107 = vpop.permute.xlu0 %1106
      %v1109 = vmul.f32 %v1092, %v1107
      %1111 = vrot.lane.b32.xlu0 %v1109, 64
      %v1112 = vpop.permute.xlu0 %1111
      %s1114 = scalar_lea.vmem [#allocation3], 40
      %1115 = vst.msk [vmem:[%s1114] sm:$0xff] %vm507, %v1112
      %s1116 = scalar_lea.vmem [#allocation2], 48
      %v1117 = vld [vmem:[%s1116] sm:$0xff]
      %v1118 = vsel %vm507, %v1112, 0
      %1120 = vmatprep.subr.mxu0 0.0
      %1121 = vmatpush1.msra.mxu0 %v500
      %1122 = vmatprep.subr.mxu0 0.0
      %1123 = vmatpush1.msra.mxu0 %v501
      %1124 = vmatprep.subr.mxu0 0.0
      %1125 = vmatpush1.msra.mxu0 %v502
      %1126 = vmatprep.subr.mxu0 0.0
      %1127 = vmatpush1.msra.mxu0 %v503
      %1128 = vmatprep.subr.mxu0 0.0
      %1129 = vmatpush1.msra.mxu0 0.0
      %1130 = vmatprep.subr.mxu0 0.0
      %1131 = vmatpush1.msra.mxu0 0.0
      %1132 = vmatprep.subr.mxu0 0.0
      %1133 = vmatpush1.msra.mxu0 0.0
      %1134 = vmatprep.subr.mxu0 0.0
      %1135 = vmatpush1.msra.mxu0 0.0
      %1136 = vmatprep.subr.mxu0 0.0
      %1137 = vmatpush1.msra.mxu0 0.0
      %1138 = vmatprep.subr.mxu0 0.0
      %1139 = vmatpush1.msra.mxu0 0.0
      %1140 = vmatprep.subr.mxu0 0.0
      %1141 = vmatpush1.msra.mxu0 0.0
      %1142 = vmatprep.subr.mxu0 0.0
      %1143 = vmatpush1.msra.mxu0 0.0
      %1144 = vmatprep.subr.mxu0 0.0
      %1145 = vmatpush1.msra.mxu0 0.0
      %1146 = vmatprep.subr.mxu0 0.0
      %1147 = vmatpush1.msra.mxu0 0.0
      %1148 = vmatprep.subr.mxu0 0.0
      %1149 = vmatpush1.msra.mxu0 0.0
      %1150 = vmatprep.subr.mxu0 0.0
      %1151 = vmatpush1.msra.mxu0 0.0
      %1152 = vmatprep.subr.mxu0 0.0
      %1153 = vmatpush1.msra.mxu0 0.0
      %1154 = vmatprep.subr.mxu0 0.0
      %1155 = vmatpush1.msra.mxu0 0.0
      %1156 = vmatprep.subr.mxu0 0.0
      %1157 = vmatpush1.msra.mxu0 0.0
      %1158 = vmatprep.subr.mxu0 0.0
      %1159 = vmatpush1.msra.mxu0 0.0
      %1160 = vmatprep.subr.mxu0 0.0
      %1161 = vmatpush1.msra.mxu0 0.0
      %1162 = vmatprep.subr.mxu0 0.0
      %1163 = vmatpush1.msra.mxu0 0.0
      %1164 = vmatprep.subr.mxu0 0.0
      %1165 = vmatpush1.msra.mxu0 0.0
      %1166 = vmatprep.subr.mxu0 0.0
      %1167 = vmatpush1.msra.mxu0 0.0
      %1168 = vmatprep.subr.mxu0 0.0
      %1169 = vmatpush1.msra.mxu0 0.0
      %1170 = vmatprep.subr.mxu0 0.0
      %1171 = vmatpush1.msra.mxu0 0.0
      %1172 = vmatprep.subr.mxu0 0.0
      %1173 = vmatpush1.msra.mxu0 0.0
      %1174 = vmatprep.subr.mxu0 0.0
      %1175 = vmatpush1.msra.mxu0 0.0
      %1176 = vmatprep.subr.mxu0 0.0
      %1177 = vmatpush1.msra.mxu0 0.0
      %1178 = vmatprep.subr.mxu0 0.0
      %1179 = vmatpush1.msra.mxu0 0.0
      %1180 = vmatprep.subr.mxu0 0.0
      %1181 = vmatpush1.msra.mxu0 0.0
      %1182 = vmatprep.subr.mxu0 0.0
      %1183 = vmatpush1.msra.mxu0 0.0
      %1184 = vmatprep.mubr.f32.mxu0 0.0
      %1185 = vmatmul.mubr.f32.gmra.mrb[0].mxu0 %v1118
      %v1186 = vpop.f32.mrb[0].mxu0
      %v1187 = vadd.f32 0.0, %v1186
      %v1188 = vpop.f32.mrb[0].mxu0
      %1189 = vdwg.mxu0
      %v1190 = vadd.f32 %v1117, %v1187
      %v1191 = vtanh.pop %v1190
      %v1192 = vmul.f32 %v1191, 0.5
      %v1193 = vadd.f32 %v1192, 0.5
      %v1194 = vmul.f32 %v1193, %v1103
      %1196 = vrot.lane.b32.xlu0 %v1191, 32
      %v1197 = vpop.permute.xlu0 %1196
      %v1199 = vmul.f32 %v1193, %v1197
      %1201 = vrot.lane.b32.xlu0 %v1199, 32
      %v1202 = vpop.permute.xlu0 %1201
      %v1204 = vadd.f32 %v1194, %v1202
      %v1205 = vtanh.pop %v1204
      %1207 = vrot.lane.b32.xlu0 %v1205, 32
      %v1208 = vpop.permute.xlu0 %1207
      %v1210 = vmul.f32 %v1193, %v1208
      %1212 = vrot.lane.b32.xlu0 %v1210, 64
      %v1213 = vpop.permute.xlu0 %1212
      %s1215 = scalar_lea.vmem [#allocation3], 48
      %1216 = vst.msk [vmem:[%s1215] sm:$0xff] %vm507, %v1213
      %s1217 = scalar_lea.vmem [#allocation2], 56
      %v1218 = vld [vmem:[%s1217] sm:$0xff]
      %v1219 = vsel %vm507, %v1213, 0
      %1221 = vmatprep.subr.mxu0 0.0
      %1222 = vmatpush1.msra.mxu0 %v500
      %1223 = vmatprep.subr.mxu0 0.0
      %1224 = vmatpush1.msra.mxu0 %v501
      %1225 = vmatprep.subr.mxu0 0.0
      %1226 = vmatpush1.msra.mxu0 %v502
      %1227 = vmatprep.subr.mxu0 0.0
      %1228 = vmatpush1.msra.mxu0 %v503
      %1229 = vmatprep.subr.mxu0 0.0
      %1230 = vmatpush1.msra.mxu0 0.0
      %1231 = vmatprep.subr.mxu0 0.0
      %1232 = vmatpush1.msra.mxu0 0.0
      %1233 = vmatprep.subr.mxu0 0.0
      %1234 = vmatpush1.msra.mxu0 0.0
      %1235 = vmatprep.subr.mxu0 0.0
      %1236 = vmatpush1.msra.mxu0 0.0
      %1237 = vmatprep.subr.mxu0 0.0
      %1238 = vmatpush1.msra.mxu0 0.0
      %1239 = vmatprep.subr.mxu0 0.0
      %1240 = vmatpush1.msra.mxu0 0.0
      %1241 = vmatprep.subr.mxu0 0.0
      %1242 = vmatpush1.msra.mxu0 0.0
      %1243 = vmatprep.subr.mxu0 0.0
      %1244 = vmatpush1.msra.mxu0 0.0
      %1245 = vmatprep.subr.mxu0 0.0
      %1246 = vmatpush1.msra.mxu0 0.0
      %1247 = vmatprep.subr.mxu0 0.0
      %1248 = vmatpush1.msra.mxu0 0.0
      %1249 = vmatprep.subr.mxu0 0.0
      %1250 = vmatpush1.msra.mxu0 0.0
      %1251 = vmatprep.subr.mxu0 0.0
      %1252 = vmatpush1.msra.mxu0 0.0
      %1253 = vmatprep.subr.mxu0 0.0
      %1254 = vmatpush1.msra.mxu0 0.0
      %1255 = vmatprep.subr.mxu0 0.0
      %1256 = vmatpush1.msra.mxu0 0.0
      %1257 = vmatprep.subr.mxu0 0.0
      %1258 = vmatpush1.msra.mxu0 0.0
      %1259 = vmatprep.subr.mxu0 0.0
      %1260 = vmatpush1.msra.mxu0 0.0
      %1261 = vmatprep.subr.mxu0 0.0
      %1262 = vmatpush1.msra.mxu0 0.0
      %1263 = vmatprep.subr.mxu0 0.0
      %1264 = vmatpush1.msra.mxu0 0.0
      %1265 = vmatprep.subr.mxu0 0.0
      %1266 = vmatpush1.msra.mxu0 0.0
      %1267 = vmatprep.subr.mxu0 0.0
      %1268 = vmatpush1.msra.mxu0 0.0
      %1269 = vmatprep.subr.mxu0 0.0
      %1270 = vmatpush1.msra.mxu0 0.0
      %1271 = vmatprep.subr.mxu0 0.0
      %1272 = vmatpush1.msra.mxu0 0.0
      %1273 = vmatprep.subr.mxu0 0.0
      %1274 = vmatpush1.msra.mxu0 0.0
      %1275 = vmatprep.subr.mxu0 0.0
      %1276 = vmatpush1.msra.mxu0 0.0
      %1277 = vmatprep.subr.mxu0 0.0
      %1278 = vmatpush1.msra.mxu0 0.0
      %1279 = vmatprep.subr.mxu0 0.0
      %1280 = vmatpush1.msra.mxu0 0.0
      %1281 = vmatprep.subr.mxu0 0.0
      %1282 = vmatpush1.msra.mxu0 0.0
      %1283 = vmatprep.subr.mxu0 0.0
      %1284 = vmatpush1.msra.mxu0 0.0
      %1285 = vmatprep.mubr.f32.mxu0 0.0
      %1286 = vmatmul.mubr.f32.gmra.mrb[0].mxu0 %v1219
      %v1287 = vpop.f32.mrb[0].mxu0
      %v1288 = vadd.f32 0.0, %v1287
      %v1289 = vpop.f32.mrb[0].mxu0
      %1290 = vdwg.mxu0
      %v1291 = vadd.f32 %v1218, %v1288
      %v1292 = vtanh.pop %v1291
      %v1293 = vmul.f32 %v1292, 0.5
      %v1294 = vadd.f32 %v1293, 0.5
      %v1295 = vmul.f32 %v1294, %v1204
      %1297 = vrot.lane.b32.xlu0 %v1292, 32
      %v1298 = vpop.permute.xlu0 %1297
      %v1300 = vmul.f32 %v1294, %v1298
      %1302 = vrot.lane.b32.xlu0 %v1300, 32
      %v1303 = vpop.permute.xlu0 %1302
      %v1305 = vadd.f32 %v1295, %v1303
      %v1306 = vtanh.pop %v1305
      %1308 = vrot.lane.b32.xlu0 %v1306, 32
      %v1309 = vpop.permute.xlu0 %1308
      %v1311 = vmul.f32 %v1294, %v1309
      %1313 = vrot.lane.b32.xlu0 %v1311, 64
      %v1314 = vpop.permute.xlu0 %1313
      %s1316 = scalar_lea.vmem [#allocation3], 56
      %1317 = vst.msk [vmem:[%s1316] sm:$0xff] %vm507, %v1314
      %1318 = vst.msk [vmem:[#allocation4] sm:$0xff] %vm507, %v1314
      %1320 = vrot.lane.b32.xlu0 %v1305, 96
      %v1321 = vpop.permute.xlu0 %1320
      %1323 = vst.msk [vmem:[#allocation5] sm:$0xff] %vm507, %v1321
      %v1324 = vld [vmem:[%s327] sm:$0xff]
      %v1325 = vld [vmem:[%s327 + $0x8] sm:$0xff]
      %v1326 = vld [vmem:[%s327 + $0x10] sm:$0xff]
      %v1327 = vld [vmem:[%s327 + $0x18] sm:$0xff]
      %v1328 = vld [vmem:[#allocation3] sm:$0xff]
      %v1329 = vld [vmem:[#allocation3 + $0x8] sm:$0xff]
      %v1330 = vld [vmem:[#allocation3 + $0x10] sm:$0xff]
      %v1331 = vld [vmem:[#allocation3 + $0x18] sm:$0xff]
      %v1332 = vld [vmem:[#allocation3 + $0x20] sm:$0xff]
      %v1333 = vld [vmem:[#allocation3 + $0x28] sm:$0xff]
      %v1334 = vld [vmem:[#allocation3 + $0x30] sm:$0xff]
      %v1335 = vld [vmem:[#allocation3 + $0x38] sm:$0xff]
      %v1337 = vsel %vm507, %v1328, 0
      %v1340 = vsel %vm507, %v1329, 0
      %v1343 = vsel %vm507, %v1330, 0
      %v1346 = vsel %vm507, %v1331, 0
      %v1349 = vsel %vm507, %v1332, 0
      %v1352 = vsel %vm507, %v1333, 0
      %v1355 = vsel %vm507, %v1334, 0
      %v1358 = vsel %vm507, %v1335, 0
      %1360 = vmatprep.subr.mxu0 0.0
      %1361 = vmatpush1.msra.mxu0 %v1324
      %1362 = vmatprep.subr.mxu0 0.0
      %1363 = vmatpush1.msra.mxu0 %v1325
      %1364 = vmatprep.subr.mxu0 0.0
      %1365 = vmatpush1.msra.mxu0 %v1326
      %1366 = vmatprep.subr.mxu0 0.0
      %1367 = vmatpush1.msra.mxu0 %v1327
      %1368 = vmatprep.subr.mxu0 0.0
      %1369 = vmatpush1.msra.mxu0 0.0
      %1370 = vmatprep.subr.mxu0 0.0
      %1371 = vmatpush1.msra.mxu0 0.0
      %1372 = vmatprep.subr.mxu0 0.0
      %1373 = vmatpush1.msra.mxu0 0.0
      %1374 = vmatprep.subr.mxu0 0.0
      %1375 = vmatpush1.msra.mxu0 0.0
      %1376 = vmatprep.subr.mxu0 0.0
      %1377 = vmatpush1.msra.mxu0 0.0
      %1378 = vmatprep.subr.mxu0 0.0
      %1379 = vmatpush1.msra.mxu0 0.0
      %1380 = vmatprep.subr.mxu0 0.0
      %1381 = vmatpush1.msra.mxu0 0.0
      %1382 = vmatprep.subr.mxu0 0.0
      %1383 = vmatpush1.msra.mxu0 0.0
      %1384 = vmatprep.subr.mxu0 0.0
      %1385 = vmatpush1.msra.mxu0 0.0
      %1386 = vmatprep.subr.mxu0 0.0
      %1387 = vmatpush1.msra.mxu0 0.0
      %1388 = vmatprep.subr.mxu0 0.0
      %1389 = vmatpush1.msra.mxu0 0.0
      %1390 = vmatprep.subr.mxu0 0.0
      %1391 = vmatpush1.msra.mxu0 0.0
      %1392 = vmatprep.subr.mxu0 0.0
      %1393 = vmatpush1.msra.mxu0 0.0
      %1394 = vmatprep.subr.mxu0 0.0
      %1395 = vmatpush1.msra.mxu0 0.0
      %1396 = vmatprep.subr.mxu0 0.0
      %1397 = vmatpush1.msra.mxu0 0.0
      %1398 = vmatprep.subr.mxu0 0.0
      %1399 = vmatpush1.msra.mxu0 0.0
      %1400 = vmatprep.subr.mxu0 0.0
      %1401 = vmatpush1.msra.mxu0 0.0
      %1402 = vmatprep.subr.mxu0 0.0
      %1403 = vmatpush1.msra.mxu0 0.0
      %1404 = vmatprep.subr.mxu0 0.0
      %1405 = vmatpush1.msra.mxu0 0.0
      %1406 = vmatprep.subr.mxu0 0.0
      %1407 = vmatpush1.msra.mxu0 0.0
      %1408 = vmatprep.subr.mxu0 0.0
      %1409 = vmatpush1.msra.mxu0 0.0
      %1410 = vmatprep.subr.mxu0 0.0
      %1411 = vmatpush1.msra.mxu0 0.0
      %1412 = vmatprep.subr.mxu0 0.0
      %1413 = vmatpush1.msra.mxu0 0.0
      %1414 = vmatprep.subr.mxu0 0.0
      %1415 = vmatpush1.msra.mxu0 0.0
      %1416 = vmatprep.subr.mxu0 0.0
      %1417 = vmatpush1.msra.mxu0 0.0
      %1418 = vmatprep.subr.mxu0 0.0
      %1419 = vmatpush1.msra.mxu0 0.0
      %1420 = vmatprep.subr.mxu0 0.0
      %1421 = vmatpush1.msra.mxu0 0.0
      %1422 = vmatprep.subr.mxu0 0.0
      %1423 = vmatpush1.msra.mxu0 0.0
      %1424 = vmatprep.mubr.f32.mxu0 0.0
      %1425 = vmatmul.mubr.f32.gmra.mrb[0].mxu0 %v1337
      %v1426 = vpop.f32.mrb[0].mxu0
      %v1427 = vadd.f32 0.0, %v1426
      %v1428 = vpop.f32.mrb[0].mxu0
      %1429 = vmatprep.mubr.f32.mxu0 0.0
      %1430 = vmatmul.mubr.f32.gmra.mrb[0].mxu0 %v1340
      %v1431 = vpop.f32.mrb[0].mxu0
      %v1432 = vadd.f32 0.0, %v1431
      %v1433 = vpop.f32.mrb[0].mxu0
      %1434 = vmatprep.mubr.f32.mxu0 0.0
      %1435 = vmatmul.mubr.f32.gmra.mrb[0].mxu0 %v1343
      %v1436 = vpop.f32.mrb[0].mxu0
      %v1437 = vadd.f32 0.0, %v1436
      %v1438 = vpop.f32.mrb[0].mxu0
      %1439 = vmatprep.mubr.f32.mxu0 0.0
      %1440 = vmatmul.mubr.f32.gmra.mrb[0].mxu0 %v1346
      %v1441 = vpop.f32.mrb[0].mxu0
      %v1442 = vadd.f32 0.0, %v1441
      %v1443 = vpop.f32.mrb[0].mxu0
      %1444 = vmatprep.mubr.f32.mxu0 0.0
      %1445 = vmatmul.mubr.f32.gmra.mrb[0].mxu0 %v1349
      %v1446 = vpop.f32.mrb[0].mxu0
      %v1447 = vadd.f32 0.0, %v1446
      %v1448 = vpop.f32.mrb[0].mxu0
      %1449 = vmatprep.mubr.f32.mxu0 0.0
      %1450 = vmatmul.mubr.f32.gmra.mrb[0].mxu0 %v1352
      %v1451 = vpop.f32.mrb[0].mxu0
      %v1452 = vadd.f32 0.0, %v1451
      %v1453 = vpop.f32.mrb[0].mxu0
      %1454 = vmatprep.mubr.f32.mxu0 0.0
      %1455 = vmatmul.mubr.f32.gmra.mrb[0].mxu0 %v1355
      %v1456 = vpop.f32.mrb[0].mxu0
      %v1457 = vadd.f32 0.0, %v1456
      %v1458 = vpop.f32.mrb[0].mxu0
      %1459 = vmatprep.mubr.f32.mxu0 0.0
      %1460 = vmatmul.mubr.f32.gmra.mrb[0].mxu0 %v1358
      %v1461 = vpop.f32.mrb[0].mxu0
      %v1462 = vadd.f32 0.0, %v1461
      %v1463 = vpop.f32.mrb[0].mxu0
      %1464 = vdwg.mxu0
      %1465 = vst [vmem:[%s336] sm:$0xff] %v1427
      %1466 = vst [vmem:[%s336 + $0x8] sm:$0xff] %v1432
      %1467 = vst [vmem:[%s336 + $0x10] sm:$0xff] %v1437
      %1468 = vst [vmem:[%s336 + $0x18] sm:$0xff] %v1442
      %1469 = vst [vmem:[%s336 + $0x20] sm:$0xff] %v1447
      %1470 = vst [vmem:[%s336 + $0x28] sm:$0xff] %v1452
      %1471 = vst [vmem:[%s336 + $0x30] sm:$0xff] %v1457
      %1472 = vst [vmem:[%s336 + $0x38] sm:$0xff] %v1462
      %s1473 = smul.u32 8, %s21
      %p1474 = scmp.lt.s32.totalorder %s20, 1
      %s1475 = scalar_select %p1474, %s20, 1
      %p1476 = scmp.lt.s32.totalorder %s1473, 7
      %s1477 = scalar_select %p1476, %s1473, 7
      %s1478 = smul.addr %s1475, 8
      %s1479 = sadd.s32 %s1477, %s1478
      %s1480 = smul.addr %s1479, 8
      %s1481 = scalar_lea.vmem %s5, %s1480
      // Predicated region
      $region45: #{_lstm2_forward.1} parent=39 // pred_check
        %p1482 = pneg %p180
      $region46: #{_lstm2_forward.1} parent=39 // pred_check_branch
        %1484 = sbr.rel (%p1482) target = $region48
      $region47: #{_lstm2_forward.1} parent=39 // pred_region
        %s1485 = smul.u32 8, %s21
      $region48: #{_lstm2_forward.1} parent=39 // pred_fallthru
        _
    $region40: #{_lstm2_forward.1} parent=5 // pred_fallthru
      _
    %p1486 = scmp.le.s32.totalorder 2, %s11
    // Predicated region
    $region49: #{_lstm2_forward.1} parent=5 // pred_check
      %p1487 = pneg %p1486
    $region50: #{_lstm2_forward.1} parent=5 // pred_check_branch
      %1489 = sbr.rel (%p1487) target = $region52
    $region51: #{_lstm2_forward.1} parent=5 // pred_region
      %s1490 = ssub.s32 %s11, 2
      // Predicated region
      $region53: #{_lstm2_forward.1} parent=51 // pred_check
        %p1491 = pneg %p186
      $region54: #{_lstm2_forward.1} parent=51 // pred_check_branch
        %1493 = sbr.rel (%p1491) target = $region56
      $region55: #{_lstm2_forward.1} parent=51 // pred_region
        %s1494 = smul.u32 8, %s23
        %p1495 = scmp.lt.s32.totalorder %s22, 1
        %s1496 = scalar_select %p1495, %s22, 1
        %p1497 = scmp.lt.s32.totalorder %s1494, 7
        %s1498 = scalar_select %p1497, %s1494, 7
        %s1499 = smul.addr %s1496, 8
        %s1500 = sadd.s32 %s1498, %s1499
        %s1501 = smul.addr %s1500, 8
        %s1502 = scalar_lea.vmem %s5, %s1501
      $region56: #{_lstm2_forward.1} parent=51 // pred_fallthru
        _
    $region52: #{_lstm2_forward.1} parent=5 // pred_fallthru
      _
  $region6: #{_lstm2_forward.1} parent=0 // loop_footer
    %s15 = sadd.s32 1, %s11
  $region7: #{_lstm2_forward.1} parent=0 // loop_footer_branch
    %10 = sbr.rel target = $region3
  $region8: #{_lstm2_forward.1} parent=0 // loop_exit
    _

</llo_original>
